<compile_context>
chip_gen: v7x
topology: tpu7x:2x2x1
jax: 0.10.0
libtpu: 0.0.40
codegen_flags: <defaults>
</compile_context>

<pallas_src>
import math

import jax
import jax.numpy as jnp
from jax.experimental import pallas as pl
from jax.experimental.pallas import tpu as pltpu

# ---------------- model config (small, lane-friendly test sizes) ----------------
DIM_EMB = 32                     # dim_embeddings
DIM_ENC = 128                    # dim_encoder (reference default 102 -> padded to 128 lanes)
N_HEADS = 4
DIM_HEAD = DIM_ENC // N_HEADS
DIM_FF = 128                     # TransformerEncoder FFN width
DIM_ENC_FF = 128                 # Connection FFN width
NEG_INF = -1e9
LN_EPS = 1e-5
MXU_DTYPE = jnp.bfloat16         # matmul operand dtype (f32 accumulation everywhere)

TRANS_NAMES = ("win", "wq", "wk", "wv", "wo", "w1", "b1", "w2", "b2",
               "g1", "be1", "g2", "be2")
ATTN_NAMES = ("wq", "wk", "wv", "wo", "w1", "b1", "w2", "b2",
              "g1", "be1", "g2", "be2")
S2V_NAMES = ("watt", "wout", "bout")


# ---------------- in-kernel helpers (traced inside pallas kernels) ----------------
def _dot(a, b):
    """MXU matmul: bf16 operands, f32 accumulation."""
    return jnp.dot(a.astype(MXU_DTYPE), b.astype(MXU_DTYPE),
                   preferred_element_type=jnp.float32)


def _layer_norm(x, g, b):
    mu = jnp.mean(x, axis=-1, keepdims=True)
    var = jnp.mean((x - mu) ** 2, axis=-1, keepdims=True)
    return (x - mu) * jax.lax.rsqrt(var + LN_EPS) * g + b


def _ffn(x, w1, b1, w2, b2):
    """Position-wise FFN; batch*seq folded into the matmul M dimension."""
    B, S, D = x.shape
    h = jnp.maximum(_dot(x.reshape(B * S, D), w1) + b1, 0.0)
    y = _dot(h, w2) + b2
    return y.reshape(B, S, w2.shape[1])


def _mha(xq, xkv, wq, wk, wv, wo, kv_mask):
    """Batched multi-head attention.

    xq: [B, Sq, D], xkv: [B, Sk, D], kv_mask: [B, 1, Sk] bool.
    Heads are handled with full-lane head masks + batched einsums: no
    sub-128-lane activation slices and no concatenate (per perf review).
    """
    B, Sq, D = xq.shape
    Sk = xkv.shape[1]
    q = _dot(xq.reshape(B * Sq, D), wq).reshape(B, Sq, D)
    k = _dot(xkv.reshape(B * Sk, D), wk).reshape(B, Sk, D)
    v = _dot(xkv.reshape(B * Sk, D), wv).reshape(B, Sk, D)
    kc = k.astype(MXU_DTYPE)
    vc = v.astype(MXU_DTYPE)

    scale = 1.0 / math.sqrt(DIM_HEAD)
    lane = jax.lax.broadcasted_iota(jnp.int32, (1, 1, D), 2)
    ctx = jnp.zeros((B, Sq, D), jnp.float32)
    for h in range(N_HEADS):                       # static unroll over heads
        hm = jnp.logical_and(lane >= h * DIM_HEAD,
                             lane < (h + 1) * DIM_HEAD).astype(jnp.float32)
        # (q * hm) . k over full D == q_h . k_h  (zeroed lanes contribute 0)
        s = jnp.einsum("bqd,bkd->bqk", (q * hm).astype(MXU_DTYPE), kc,
                       preferred_element_type=jnp.float32) * scale
        s = jnp.where(kv_mask, s, NEG_INF)
        m = jnp.max(s, axis=-1, keepdims=True)
        e = jnp.exp(s - m)
        p = e * pl.reciprocal(jnp.sum(e, axis=-1, keepdims=True), approx=True)
        pv = jnp.einsum("bqk,bkd->bqd", p.astype(MXU_DTYPE), vc,
                        preferred_element_type=jnp.float32)
        ctx = ctx + pv * hm                        # keep only head-h lanes
    return _dot(ctx.reshape(B * Sq, D), wo).reshape(B, Sq, D)


def _encoder_block(x, lens, w):
    """TransformerEncoder: proj -> masked self-MHA + LN -> FFN + LN.

    x: [B, S, E_in], lens: [B, 1] int32.
    """
    B, S, E = x.shape
    h = _dot(x.reshape(B * S, E), w["win"]).reshape(B, S, DIM_ENC)
    kv_mask = jax.lax.broadcasted_iota(jnp.int32, (B, 1, S), 2) < lens.reshape(B, 1, 1)
    a = _mha(h, h, w["wq"], w["wk"], w["wv"], w["wo"], kv_mask)
    h1 = _layer_norm(h + a, w["g1"], w["be1"])
    f = _ffn(h1, w["w1"], w["b1"], w["w2"], w["b2"])
    return _layer_norm(h1 + f, w["g2"], w["be2"])


def _connection_block(xq, xkv, q_len, kv_len, w):
    """Connection: cross-MHA + LN -> FFN + LN, kv padding masked, query padding zeroed."""
    B, Sq, _ = xq.shape
    Sk = xkv.shape[1]
    kv_mask = jax.lax.broadcasted_iota(jnp.int32, (B, 1, Sk), 2) < kv_len.reshape(B, 1, 1)
    a = _mha(xq, xkv, w["wq"], w["wk"], w["wv"], w["wo"], kv_mask)
    h1 = _layer_norm(xq + a, w["g1"], w["be1"])
    f = _ffn(h1, w["w1"], w["b1"], w["w2"], w["b2"])
    h2 = _layer_norm(h1 + f, w["g2"], w["be2"])
    q_mask = (jax.lax.broadcasted_iota(jnp.int32, (B, Sq, 1), 1)
              < q_len.reshape(B, 1, 1)).astype(h2.dtype)
    return h2 * q_mask


def _seq2vec(x, lens, w):
    """Masked attention pooling + output projection: [B, S, D] -> [B, D].

    Scores computed as a VPU multiply + reduce against watt stored as [1, D]
    (no degenerate [S, 1]-column matmul).
    """
    B, S, D = x.shape
    watt = w["watt"].reshape(1, 1, D)
    scores = jnp.sum(x * watt, axis=-1, keepdims=True)            # [B, S, 1]
    mask = jax.lax.broadcasted_iota(jnp.int32, (B, S, 1), 1) < lens.reshape(B, 1, 1)
    scores = jnp.where(mask, scores, NEG_INF)
    m = jnp.max(scores, axis=1, keepdims=True)
    e = jnp.exp(scores - m) * mask.astype(jnp.float32)
    p = e * pl.reciprocal(jnp.sum(e, axis=1, keepdims=True), approx=True)
    vec = jnp.sum(p * x, axis=1)                                   # [B, D]
    return _dot(vec, w["wout"]) + w["bout"]


# ---------------- kernel 1: context TransformerEncoder (whole batch, one call) --------
def _ctx_encoder_kernel(*refs):
    x_ref, len_ref = refs[0], refs[1]
    tw = {n: refs[2 + i][...] for i, n in enumerate(TRANS_NAMES)}
    out_ref = refs[-1]
    out_ref[...] = _encoder_block(x_ref[...], len_ref[...], tw)


def encode_context(context, ctx_lens, trans_params):
    """context: [B, S, DIM_EMB], ctx_lens: [B, 1] int32 -> [B, S, DIM_ENC]."""
    B, S, _ = context.shape
    weights = [trans_params[n] for n in TRANS_NAMES]
    return pl.pallas_call(
        _ctx_encoder_kernel,
        out_shape=jax.ShapeDtypeStruct((B, S, DIM_ENC), jnp.float32),
    )(context, ctx_lens, *weights)


# ---------------- kernel 2: fused per-option pipeline (grid over options) -------------
def _option_pipeline_kernel(*refs):
    opt_ref, optlen_ref, ctxlen_ref, ctxenc_ref = refs[:4]
    n_w = len(TRANS_NAMES) + len(ATTN_NAMES) + len(S2V_NAMES)
    wrefs = refs[4:4 + n_w]
    out_ref = refs[-1]

    tw = {n: wrefs[i][...] for i, n in enumerate(TRANS_NAMES)}
    off = len(TRANS_NAMES)
    aw = {n: wrefs[off + i][...] for i, n in enumerate(ATTN_NAMES)}
    off += len(ATTN_NAMES)
    sw = {n: wrefs[off + i][...] for i, n in enumerate(S2V_NAMES)}

    opt = opt_ref[0]                      # [B, S_opt, DIM_EMB]
    opt_len = optlen_ref[0]               # [B, 1]
    ctx_len = ctxlen_ref[...]             # [B, 1]
    ctx_enc = ctxenc_ref[...]             # [B, S_ctx, DIM_ENC]

    option_enc = _encoder_block(opt, opt_len, tw)                         # transformer(option)
    attn_co = _connection_block(ctx_enc, option_enc, ctx_len, opt_len, aw)  # attn(ctx, opt)
    attn_oc = _connection_block(option_enc, ctx_enc, opt_len, ctx_len, aw)  # attn(opt, ctx)
    ctx_vecs = _seq2vec(attn_oc, opt_len, sw)                             # [B, D]
    opt_vecs = _seq2vec(attn_co, ctx_len, sw)                             # [B, D]
    # BatchInnerProduct fused in-kernel (no standalone pallas_call).
    out_ref[0] = jnp.sum(ctx_vecs * opt_vecs, axis=-1, keepdims=True)     # [B, 1]


def option_pipeline(options_t, opt_lens_t, ctx_lens, context_enc, params):
    """options_t: [n_opts, B, S_opt, E], opt_lens_t: [n_opts, B, 1] -> logits [n_opts, B]."""
    n_opts, B, S_opt, E = options_t.shape
    S_ctx = context_enc.shape[1]
    weights = ([params["transformer"][n] for n in TRANS_NAMES]
               + [params["attn"][n] for n in ATTN_NAMES]
               + [params["seq2vec"][n] for n in S2V_NAMES])

    in_specs = [
        pl.BlockSpec((1, B, S_opt, E), lambda i: (i, 0, 0, 0)),
        pl.BlockSpec((1, B, 1), lambda i: (i, 0, 0)),
        pl.BlockSpec((B, 1), lambda i: (0, 0)),
        pl.BlockSpec((B, S_ctx, DIM_ENC), lambda i: (0, 0, 0)),
    ] + [pl.BlockSpec(w.shape, lambda i, n=w.ndim: (0,) * n) for w in weights]

    out = pl.pallas_call(
        _option_pipeline_kernel,
        out_shape=jax.ShapeDtypeStruct((n_opts, B, 1), jnp.float32),
        grid=(n_opts,),
        in_specs=in_specs,
        out_specs=pl.BlockSpec((1, B, 1), lambda i: (i, 0, 0)),
        compiler_params=pltpu.CompilerParams(dimension_semantics=("parallel",)),
    )(options_t, opt_lens_t, ctx_lens, context_enc, *weights)
    return out[:, :, 0]                   # [n_opts, B]


# ---------------- forward (mirrors NaiveTransformer.forward, use_mcan=False) ----------
def naive_transformer_forward(params, context, context_ends, options, option_lens):
    B = context.shape[0]
    n_opts = options.shape[1]
    ctx_lens = jnp.asarray([ends[-1] for ends in context_ends], jnp.int32).reshape(B, 1)
    opt_lens_t = jnp.asarray(option_lens, jnp.int32).T.reshape(n_opts, B, 1)

    context_enc = encode_context(context, ctx_lens, params["transformer"])
    options_t = jnp.transpose(options, (1, 0, 2, 3))       # [n_opts, B, S_opt, E]
    logits = option_pipeline(options_t, opt_lens_t, ctx_lens, context_enc, params)
    return logits.T                                        # [B, n_options]


# ---------------- deterministic parameter init ----------------
def init_params(key):
    def dense(k, shape, scale=0.05):
        return scale * jax.random.normal(k, shape, jnp.float32)

    keys = iter(jax.random.split(key, 16))
    D = DIM_ENC
    transformer = dict(
        win=dense(next(keys), (DIM_EMB, D)),
        wq=dense(next(keys), (D, D)), wk=dense(next(keys), (D, D)),
        wv=dense(next(keys), (D, D)), wo=dense(next(keys), (D, D)),
        w1=dense(next(keys), (D, DIM_FF)), b1=jnp.zeros((1, DIM_FF), jnp.float32),
        w2=dense(next(keys), (DIM_FF, D)), b2=jnp.zeros((1, D), jnp.float32),
        g1=jnp.ones((1, D), jnp.float32), be1=jnp.zeros((1, D), jnp.float32),
        g2=jnp.ones((1, D), jnp.float32), be2=jnp.zeros((1, D), jnp.float32),
    )
    attn = dict(
        wq=dense(next(keys), (D, D)), wk=dense(next(keys), (D, D)),
        wv=dense(next(keys), (D, D)), wo=dense(next(keys), (D, D)),
        w1=dense(next(keys), (D, DIM_ENC_FF)), b1=jnp.zeros((1, DIM_ENC_FF), jnp.float32),
        w2=dense(next(keys), (DIM_ENC_FF, D)), b2=jnp.zeros((1, D), jnp.float32),
        g1=jnp.ones((1, D), jnp.float32), be1=jnp.zeros((1, D), jnp.float32),
        g2=jnp.ones((1, D), jnp.float32), be2=jnp.zeros((1, D), jnp.float32),
    )
    s2v = dict(
        watt=dense(next(keys), (1, D)),        # stored [1, D] (lane-dense; VPU mul+reduce)
        wout=dense(next(keys), (D, D)),
        bout=jnp.zeros((1, D), jnp.float32),
    )
    return dict(transformer=transformer, attn=attn, seq2vec=s2v)


if __name__ == "__main__":
    key = jax.random.PRNGKey(0)
    kp, kc, ko = jax.random.split(key, 3)
    params = init_params(kp)

    B, S_CTX, S_OPT, N_OPT = 2, 16, 8, 3
    context = jax.random.normal(kc, (B, S_CTX, DIM_EMB), jnp.float32)
    options = jax.random.normal(ko, (B, N_OPT, S_OPT, DIM_EMB), jnp.float32)
    context_ends = [[5, 10, 16], [4, 12]]     # context_lens = [16, 12]
    option_lens = [[8, 6, 5], [7, 8, 4]]      # per-batch, per-option lengths

    logits = naive_transformer_forward(params, context, context_ends, options, option_lens)
    logits = jax.block_until_ready(logits)
    assert logits.shape == (B, N_OPT) and logits.dtype == jnp.float32
    print("KERNEL_OK")
</pallas_src>

<mosaic_0001>
module attributes {stable_mosaic.version = 11 : i64} {
  func.func @_ctx_encoder_kernel(%arg0: memref<2x16x32xf32, #tpu.memory_space<vmem>>, %arg1: memref<2x1xi32, #tpu.memory_space<vmem>>, %arg2: memref<32x128xf32, #tpu.memory_space<vmem>>, %arg3: memref<128x128xf32, #tpu.memory_space<vmem>>, %arg4: memref<128x128xf32, #tpu.memory_space<vmem>>, %arg5: memref<128x128xf32, #tpu.memory_space<vmem>>, %arg6: memref<128x128xf32, #tpu.memory_space<vmem>>, %arg7: memref<128x128xf32, #tpu.memory_space<vmem>>, %arg8: memref<1x128xf32, #tpu.memory_space<vmem>>, %arg9: memref<128x128xf32, #tpu.memory_space<vmem>>, %arg10: memref<1x128xf32, #tpu.memory_space<vmem>>, %arg11: memref<1x128xf32, #tpu.memory_space<vmem>>, %arg12: memref<1x128xf32, #tpu.memory_space<vmem>>, %arg13: memref<1x128xf32, #tpu.memory_space<vmem>>, %arg14: memref<1x128xf32, #tpu.memory_space<vmem>>, %arg15: memref<2x16x128xf32, #tpu.memory_space<vmem>>) attributes {dimension_semantics = [], scalar_prefetch = 0 : i64, scratch_operands = 0 : i64, tpu.core_type = #tpu.core_type<tc>} {
    %c0 = arith.constant 0 : index
    %c0_0 = arith.constant 0 : index
    %0 = vector.load %arg2[%c0, %c0_0] : memref<32x128xf32, #tpu.memory_space<vmem>>, vector<32x128xf32>
    %c0_1 = arith.constant 0 : index
    %c0_2 = arith.constant 0 : index
    %1 = vector.load %arg3[%c0_1, %c0_2] : memref<128x128xf32, #tpu.memory_space<vmem>>, vector<128x128xf32>
    %c0_3 = arith.constant 0 : index
    %c0_4 = arith.constant 0 : index
    %2 = vector.load %arg4[%c0_3, %c0_4] : memref<128x128xf32, #tpu.memory_space<vmem>>, vector<128x128xf32>
    %c0_5 = arith.constant 0 : index
    %c0_6 = arith.constant 0 : index
    %3 = vector.load %arg5[%c0_5, %c0_6] : memref<128x128xf32, #tpu.memory_space<vmem>>, vector<128x128xf32>
    %c0_7 = arith.constant 0 : index
    %c0_8 = arith.constant 0 : index
    %4 = vector.load %arg6[%c0_7, %c0_8] : memref<128x128xf32, #tpu.memory_space<vmem>>, vector<128x128xf32>
    %c0_9 = arith.constant 0 : index
    %c0_10 = arith.constant 0 : index
    %5 = vector.load %arg7[%c0_9, %c0_10] : memref<128x128xf32, #tpu.memory_space<vmem>>, vector<128x128xf32>
    %c0_11 = arith.constant 0 : index
    %c0_12 = arith.constant 0 : index
    %6 = vector.load %arg8[%c0_11, %c0_12] : memref<1x128xf32, #tpu.memory_space<vmem>>, vector<1x128xf32>
    %c0_13 = arith.constant 0 : index
    %c0_14 = arith.constant 0 : index
    %7 = vector.load %arg9[%c0_13, %c0_14] : memref<128x128xf32, #tpu.memory_space<vmem>>, vector<128x128xf32>
    %c0_15 = arith.constant 0 : index
    %c0_16 = arith.constant 0 : index
    %8 = vector.load %arg10[%c0_15, %c0_16] : memref<1x128xf32, #tpu.memory_space<vmem>>, vector<1x128xf32>
    %c0_17 = arith.constant 0 : index
    %c0_18 = arith.constant 0 : index
    %9 = vector.load %arg11[%c0_17, %c0_18] : memref<1x128xf32, #tpu.memory_space<vmem>>, vector<1x128xf32>
    %c0_19 = arith.constant 0 : index
    %c0_20 = arith.constant 0 : index
    %10 = vector.load %arg12[%c0_19, %c0_20] : memref<1x128xf32, #tpu.memory_space<vmem>>, vector<1x128xf32>
    %c0_21 = arith.constant 0 : index
    %c0_22 = arith.constant 0 : index
    %11 = vector.load %arg13[%c0_21, %c0_22] : memref<1x128xf32, #tpu.memory_space<vmem>>, vector<1x128xf32>
    %c0_23 = arith.constant 0 : index
    %c0_24 = arith.constant 0 : index
    %12 = vector.load %arg14[%c0_23, %c0_24] : memref<1x128xf32, #tpu.memory_space<vmem>>, vector<1x128xf32>
    %c0_25 = arith.constant 0 : index
    %c0_26 = arith.constant 0 : index
    %c0_27 = arith.constant 0 : index
    %13 = vector.load %arg0[%c0_25, %c0_26, %c0_27] : memref<2x16x32xf32, #tpu.memory_space<vmem>>, vector<2x16x32xf32>
    %c0_28 = arith.constant 0 : index
    %c0_29 = arith.constant 0 : index
    %14 = vector.load %arg1[%c0_28, %c0_29] : memref<2x1xi32, #tpu.memory_space<vmem>>, vector<2x1xi32>
    %15 = vector.shape_cast %13 : vector<2x16x32xf32> to vector<32x32xf32>
    %16 = arith.truncf %15 : vector<32x32xf32> to vector<32x32xbf16>
    %17 = arith.truncf %0 : vector<32x128xf32> to vector<32x128xbf16>
    %cst = arith.constant dense<0.000000e+00> : vector<32x128xf32>
    %18 = tpu.matmul %16, %17, %cst {dimension_numbers = #tpu.dot_dimension_numbers<[1], [0], [0], [1], [0, 0, 1, 1], [], []>} : vector<32x32xbf16>, vector<32x128xbf16>, vector<32x128xf32> -> vector<32x128xf32>
    %19 = vector.shape_cast %18 : vector<32x128xf32> to vector<2x16x128xf32>
    %20 = tpu.iota {dimensions = array<i32: 2>} : vector<2x1x16xi32>
    %21 = vector.shape_cast %14 : vector<2x1xi32> to vector<2x1x1xi32>
    %22 = vector.broadcast %21 : vector<2x1x1xi32> to vector<2x1x16xi32>
    %23 = arith.cmpi slt, %20, %22 : vector<2x1x16xi32>
    %24 = vector.shape_cast %19 : vector<2x16x128xf32> to vector<32x128xf32>
    %25 = arith.truncf %24 : vector<32x128xf32> to vector<32x128xbf16>
    %26 = arith.truncf %1 : vector<128x128xf32> to vector<128x128xbf16>
    %cst_30 = arith.constant dense<0.000000e+00> : vector<32x128xf32>
    %27 = tpu.matmul %25, %26, %cst_30 {dimension_numbers = #tpu.dot_dimension_numbers<[1], [0], [0], [1], [0, 0, 1, 1], [], []>} : vector<32x128xbf16>, vector<128x128xbf16>, vector<32x128xf32> -> vector<32x128xf32>
    %28 = vector.shape_cast %27 : vector<32x128xf32> to vector<2x16x128xf32>
    %29 = vector.shape_cast %19 : vector<2x16x128xf32> to vector<32x128xf32>
    %30 = arith.truncf %29 : vector<32x128xf32> to vector<32x128xbf16>
    %31 = arith.truncf %2 : vector<128x128xf32> to vector<128x128xbf16>
    %cst_31 = arith.constant dense<0.000000e+00> : vector<32x128xf32>
    %32 = tpu.matmul %30, %31, %cst_31 {dimension_numbers = #tpu.dot_dimension_numbers<[1], [0], [0], [1], [0, 0, 1, 1], [], []>} : vector<32x128xbf16>, vector<128x128xbf16>, vector<32x128xf32> -> vector<32x128xf32>
    %33 = vector.shape_cast %32 : vector<32x128xf32> to vector<2x16x128xf32>
    %34 = vector.shape_cast %19 : vector<2x16x128xf32> to vector<32x128xf32>
    %35 = arith.truncf %34 : vector<32x128xf32> to vector<32x128xbf16>
    %36 = arith.truncf %3 : vector<128x128xf32> to vector<128x128xbf16>
    %cst_32 = arith.constant dense<0.000000e+00> : vector<32x128xf32>
    %37 = tpu.matmul %35, %36, %cst_32 {dimension_numbers = #tpu.dot_dimension_numbers<[1], [0], [0], [1], [0, 0, 1, 1], [], []>} : vector<32x128xbf16>, vector<128x128xbf16>, vector<32x128xf32> -> vector<32x128xf32>
    %38 = vector.shape_cast %37 : vector<32x128xf32> to vector<2x16x128xf32>
    %39 = arith.truncf %33 : vector<2x16x128xf32> to vector<2x16x128xbf16>
    %40 = arith.truncf %38 : vector<2x16x128xf32> to vector<2x16x128xbf16>
    %41 = tpu.iota {dimensions = array<i32: 2>} : vector<1x1x128xi32>
    %cst_33 = arith.constant 0.000000e+00 : f32
    %42 = vector.broadcast %cst_33 : f32 to vector<2x16x128xf32>
    %c0_i32 = arith.constant 0 : i32
    %43 = vector.broadcast %c0_i32 : i32 to vector<1x1x128xi32>
    %44 = arith.cmpi sge, %41, %43 : vector<1x1x128xi32>
    %c32_i32 = arith.constant 32 : i32
    %45 = vector.broadcast %c32_i32 : i32 to vector<1x1x128xi32>
    %46 = arith.cmpi slt, %41, %45 : vector<1x1x128xi32>
    %47 = arith.andi %44, %46 : vector<1x1x128xi1>
    %48 = arith.extui %47 : vector<1x1x128xi1> to vector<1x1x128xi32>
    %49 = arith.sitofp %48 : vector<1x1x128xi32> to vector<1x1x128xf32>
    %50 = vector.broadcast %49 : vector<1x1x128xf32> to vector<2x16x128xf32>
    %51 = arith.mulf %28, %50 : vector<2x16x128xf32>
    %52 = arith.truncf %51 : vector<2x16x128xf32> to vector<2x16x128xbf16>
    "tpu.trace_start"() <{level = 10 : i32, message = "bqd,bkd->bqk"}> : () -> ()
    %cst_34 = arith.constant dense<0.000000e+00> : vector<2x16x16xf32>
    %53 = tpu.matmul %52, %39, %cst_34 {dimension_numbers = #tpu.dot_dimension_numbers<[2], [2], [1], [1], [0, 0, 0, 1, 1, 1], [0], [0]>} : vector<2x16x128xbf16>, vector<2x16x128xbf16>, vector<2x16x16xf32> -> vector<2x16x16xf32>
    "tpu.trace_stop"() : () -> ()
    %cst_35 = arith.constant 0.176776692 : f32
    %54 = vector.broadcast %cst_35 : f32 to vector<2x16x16xf32>
    %55 = arith.mulf %53, %54 : vector<2x16x16xf32>
    %cst_36 = arith.constant -1.000000e+09 : f32
    %56 = vector.shape_cast %23 : vector<2x1x16xi1> to vector<2x1x16xi1>
    %57 = vector.broadcast %56 : vector<2x1x16xi1> to vector<2x16x16xi1>
    %58 = vector.broadcast %cst_36 : f32 to vector<2x16x16xf32>
    %59 = arith.select %57, %55, %58 : vector<2x16x16xi1>, vector<2x16x16xf32>
    %cst_37 = arith.constant dense<0xFF800000> : vector<2x16xf32>
    %60 = vector.multi_reduction <maximumf>, %59, %cst_37 [2] : vector<2x16x16xf32> to vector<2x16xf32>
    %61 = vector.shape_cast %60 : vector<2x16xf32> to vector<2x16x1xf32>
    %62 = vector.broadcast %61 : vector<2x16x1xf32> to vector<2x16x16xf32>
    %63 = arith.subf %59, %62 : vector<2x16x16xf32>
    %64 = math.exp %63 : vector<2x16x16xf32>
    %cst_38 = arith.constant dense<0.000000e+00> : vector<2x16xf32>
    %65 = vector.multi_reduction <add>, %64, %cst_38 [2] : vector<2x16x16xf32> to vector<2x16xf32>
    %66 = vector.shape_cast %65 : vector<2x16xf32> to vector<2x16x1xf32>
    %67 = tpu.reciprocal %66 {approx = true} : vector<2x16x1xf32> -> vector<2x16x1xf32>
    %68 = vector.broadcast %67 : vector<2x16x1xf32> to vector<2x16x16xf32>
    %69 = arith.mulf %64, %68 : vector<2x16x16xf32>
    %70 = arith.truncf %69 : vector<2x16x16xf32> to vector<2x16x16xbf16>
    "tpu.trace_start"() <{level = 10 : i32, message = "bqk,bkd->bqd"}> : () -> ()
    %cst_39 = arith.constant dense<0.000000e+00> : vector<2x16x128xf32>
    %71 = tpu.matmul %70, %40, %cst_39 {dimension_numbers = #tpu.dot_dimension_numbers<[2], [1], [1], [2], [0, 0, 0, 1, 1, 2], [0], [0]>} : vector<2x16x16xbf16>, vector<2x16x128xbf16>, vector<2x16x128xf32> -> vector<2x16x128xf32>
    "tpu.trace_stop"() : () -> ()
    %72 = vector.broadcast %49 : vector<1x1x128xf32> to vector<2x16x128xf32>
    %73 = arith.mulf %71, %72 : vector<2x16x128xf32>
    %74 = arith.addf %42, %73 : vector<2x16x128xf32>
    %c32_i32_40 = arith.constant 32 : i32
    %75 = vector.broadcast %c32_i32_40 : i32 to vector<1x1x128xi32>
    %76 = arith.cmpi sge, %41, %75 : vector<1x1x128xi32>
    %c64_i32 = arith.constant 64 : i32
    %77 = vector.broadcast %c64_i32 : i32 to vector<1x1x128xi32>
    %78 = arith.cmpi slt, %41, %77 : vector<1x1x128xi32>
    %79 = arith.andi %76, %78 : vector<1x1x128xi1>
    %80 = arith.extui %79 : vector<1x1x128xi1> to vector<1x1x128xi32>
    %81 = arith.sitofp %80 : vector<1x1x128xi32> to vector<1x1x128xf32>
    %82 = vector.broadcast %81 : vector<1x1x128xf32> to vector<2x16x128xf32>
    %83 = arith.mulf %28, %82 : vector<2x16x128xf32>
    %84 = arith.truncf %83 : vector<2x16x128xf32> to vector<2x16x128xbf16>
    "tpu.trace_start"() <{level = 10 : i32, message = "bqd,bkd->bqk"}> : () -> ()
    %cst_41 = arith.constant dense<0.000000e+00> : vector<2x16x16xf32>
    %85 = tpu.matmul %84, %39, %cst_41 {dimension_numbers = #tpu.dot_dimension_numbers<[2], [2], [1], [1], [0, 0, 0, 1, 1, 1], [0], [0]>} : vector<2x16x128xbf16>, vector<2x16x128xbf16>, vector<2x16x16xf32> -> vector<2x16x16xf32>
    "tpu.trace_stop"() : () -> ()
    %cst_42 = arith.constant 0.176776692 : f32
    %86 = vector.broadcast %cst_42 : f32 to vector<2x16x16xf32>
    %87 = arith.mulf %85, %86 : vector<2x16x16xf32>
    %cst_43 = arith.constant -1.000000e+09 : f32
    %88 = vector.shape_cast %23 : vector<2x1x16xi1> to vector<2x1x16xi1>
    %89 = vector.broadcast %88 : vector<2x1x16xi1> to vector<2x16x16xi1>
    %90 = vector.broadcast %cst_43 : f32 to vector<2x16x16xf32>
    %91 = arith.select %89, %87, %90 : vector<2x16x16xi1>, vector<2x16x16xf32>
    %cst_44 = arith.constant dense<0xFF800000> : vector<2x16xf32>
    %92 = vector.multi_reduction <maximumf>, %91, %cst_44 [2] : vector<2x16x16xf32> to vector<2x16xf32>
    %93 = vector.shape_cast %92 : vector<2x16xf32> to vector<2x16x1xf32>
    %94 = vector.broadcast %93 : vector<2x16x1xf32> to vector<2x16x16xf32>
    %95 = arith.subf %91, %94 : vector<2x16x16xf32>
    %96 = math.exp %95 : vector<2x16x16xf32>
    %cst_45 = arith.constant dense<0.000000e+00> : vector<2x16xf32>
    %97 = vector.multi_reduction <add>, %96, %cst_45 [2] : vector<2x16x16xf32> to vector<2x16xf32>
    %98 = vector.shape_cast %97 : vector<2x16xf32> to vector<2x16x1xf32>
    %99 = tpu.reciprocal %98 {approx = true} : vector<2x16x1xf32> -> vector<2x16x1xf32>
    %100 = vector.broadcast %99 : vector<2x16x1xf32> to vector<2x16x16xf32>
    %101 = arith.mulf %96, %100 : vector<2x16x16xf32>
    %102 = arith.truncf %101 : vector<2x16x16xf32> to vector<2x16x16xbf16>
    "tpu.trace_start"() <{level = 10 : i32, message = "bqk,bkd->bqd"}> : () -> ()
    %cst_46 = arith.constant dense<0.000000e+00> : vector<2x16x128xf32>
    %103 = tpu.matmul %102, %40, %cst_46 {dimension_numbers = #tpu.dot_dimension_numbers<[2], [1], [1], [2], [0, 0, 0, 1, 1, 2], [0], [0]>} : vector<2x16x16xbf16>, vector<2x16x128xbf16>, vector<2x16x128xf32> -> vector<2x16x128xf32>
    "tpu.trace_stop"() : () -> ()
    %104 = vector.broadcast %81 : vector<1x1x128xf32> to vector<2x16x128xf32>
    %105 = arith.mulf %103, %104 : vector<2x16x128xf32>
    %106 = arith.addf %74, %105 : vector<2x16x128xf32>
    %c64_i32_47 = arith.constant 64 : i32
    %107 = vector.broadcast %c64_i32_47 : i32 to vector<1x1x128xi32>
    %108 = arith.cmpi sge, %41, %107 : vector<1x1x128xi32>
    %c96_i32 = arith.constant 96 : i32
    %109 = vector.broadcast %c96_i32 : i32 to vector<1x1x128xi32>
    %110 = arith.cmpi slt, %41, %109 : vector<1x1x128xi32>
    %111 = arith.andi %108, %110 : vector<1x1x128xi1>
    %112 = arith.extui %111 : vector<1x1x128xi1> to vector<1x1x128xi32>
    %113 = arith.sitofp %112 : vector<1x1x128xi32> to vector<1x1x128xf32>
    %114 = vector.broadcast %113 : vector<1x1x128xf32> to vector<2x16x128xf32>
    %115 = arith.mulf %28, %114 : vector<2x16x128xf32>
    %116 = arith.truncf %115 : vector<2x16x128xf32> to vector<2x16x128xbf16>
    "tpu.trace_start"() <{level = 10 : i32, message = "bqd,bkd->bqk"}> : () -> ()
    %cst_48 = arith.constant dense<0.000000e+00> : vector<2x16x16xf32>
    %117 = tpu.matmul %116, %39, %cst_48 {dimension_numbers = #tpu.dot_dimension_numbers<[2], [2], [1], [1], [0, 0, 0, 1, 1, 1], [0], [0]>} : vector<2x16x128xbf16>, vector<2x16x128xbf16>, vector<2x16x16xf32> -> vector<2x16x16xf32>
    "tpu.trace_stop"() : () -> ()
    %cst_49 = arith.constant 0.176776692 : f32
    %118 = vector.broadcast %cst_49 : f32 to vector<2x16x16xf32>
    %119 = arith.mulf %117, %118 : vector<2x16x16xf32>
    %cst_50 = arith.constant -1.000000e+09 : f32
    %120 = vector.shape_cast %23 : vector<2x1x16xi1> to vector<2x1x16xi1>
    %121 = vector.broadcast %120 : vector<2x1x16xi1> to vector<2x16x16xi1>
    %122 = vector.broadcast %cst_50 : f32 to vector<2x16x16xf32>
    %123 = arith.select %121, %119, %122 : vector<2x16x16xi1>, vector<2x16x16xf32>
    %cst_51 = arith.constant dense<0xFF800000> : vector<2x16xf32>
    %124 = vector.multi_reduction <maximumf>, %123, %cst_51 [2] : vector<2x16x16xf32> to vector<2x16xf32>
    %125 = vector.shape_cast %124 : vector<2x16xf32> to vector<2x16x1xf32>
    %126 = vector.broadcast %125 : vector<2x16x1xf32> to vector<2x16x16xf32>
    %127 = arith.subf %123, %126 : vector<2x16x16xf32>
    %128 = math.exp %127 : vector<2x16x16xf32>
    %cst_52 = arith.constant dense<0.000000e+00> : vector<2x16xf32>
    %129 = vector.multi_reduction <add>, %128, %cst_52 [2] : vector<2x16x16xf32> to vector<2x16xf32>
    %130 = vector.shape_cast %129 : vector<2x16xf32> to vector<2x16x1xf32>
    %131 = tpu.reciprocal %130 {approx = true} : vector<2x16x1xf32> -> vector<2x16x1xf32>
    %132 = vector.broadcast %131 : vector<2x16x1xf32> to vector<2x16x16xf32>
    %133 = arith.mulf %128, %132 : vector<2x16x16xf32>
    %134 = arith.truncf %133 : vector<2x16x16xf32> to vector<2x16x16xbf16>
    "tpu.trace_start"() <{level = 10 : i32, message = "bqk,bkd->bqd"}> : () -> ()
    %cst_53 = arith.constant dense<0.000000e+00> : vector<2x16x128xf32>
    %135 = tpu.matmul %134, %40, %cst_53 {dimension_numbers = #tpu.dot_dimension_numbers<[2], [1], [1], [2], [0, 0, 0, 1, 1, 2], [0], [0]>} : vector<2x16x16xbf16>, vector<2x16x128xbf16>, vector<2x16x128xf32> -> vector<2x16x128xf32>
    "tpu.trace_stop"() : () -> ()
    %136 = vector.broadcast %113 : vector<1x1x128xf32> to vector<2x16x128xf32>
    %137 = arith.mulf %135, %136 : vector<2x16x128xf32>
    %138 = arith.addf %106, %137 : vector<2x16x128xf32>
    %c96_i32_54 = arith.constant 96 : i32
    %139 = vector.broadcast %c96_i32_54 : i32 to vector<1x1x128xi32>
    %140 = arith.cmpi sge, %41, %139 : vector<1x1x128xi32>
    %c128_i32 = arith.constant 128 : i32
    %141 = vector.broadcast %c128_i32 : i32 to vector<1x1x128xi32>
    %142 = arith.cmpi slt, %41, %141 : vector<1x1x128xi32>
    %143 = arith.andi %140, %142 : vector<1x1x128xi1>
    %144 = arith.extui %143 : vector<1x1x128xi1> to vector<1x1x128xi32>
    %145 = arith.sitofp %144 : vector<1x1x128xi32> to vector<1x1x128xf32>
    %146 = vector.broadcast %145 : vector<1x1x128xf32> to vector<2x16x128xf32>
    %147 = arith.mulf %28, %146 : vector<2x16x128xf32>
    %148 = arith.truncf %147 : vector<2x16x128xf32> to vector<2x16x128xbf16>
    "tpu.trace_start"() <{level = 10 : i32, message = "bqd,bkd->bqk"}> : () -> ()
    %cst_55 = arith.constant dense<0.000000e+00> : vector<2x16x16xf32>
    %149 = tpu.matmul %148, %39, %cst_55 {dimension_numbers = #tpu.dot_dimension_numbers<[2], [2], [1], [1], [0, 0, 0, 1, 1, 1], [0], [0]>} : vector<2x16x128xbf16>, vector<2x16x128xbf16>, vector<2x16x16xf32> -> vector<2x16x16xf32>
    "tpu.trace_stop"() : () -> ()
    %cst_56 = arith.constant 0.176776692 : f32
    %150 = vector.broadcast %cst_56 : f32 to vector<2x16x16xf32>
    %151 = arith.mulf %149, %150 : vector<2x16x16xf32>
    %cst_57 = arith.constant -1.000000e+09 : f32
    %152 = vector.shape_cast %23 : vector<2x1x16xi1> to vector<2x1x16xi1>
    %153 = vector.broadcast %152 : vector<2x1x16xi1> to vector<2x16x16xi1>
    %154 = vector.broadcast %cst_57 : f32 to vector<2x16x16xf32>
    %155 = arith.select %153, %151, %154 : vector<2x16x16xi1>, vector<2x16x16xf32>
    %cst_58 = arith.constant dense<0xFF800000> : vector<2x16xf32>
    %156 = vector.multi_reduction <maximumf>, %155, %cst_58 [2] : vector<2x16x16xf32> to vector<2x16xf32>
    %157 = vector.shape_cast %156 : vector<2x16xf32> to vector<2x16x1xf32>
    %158 = vector.broadcast %157 : vector<2x16x1xf32> to vector<2x16x16xf32>
    %159 = arith.subf %155, %158 : vector<2x16x16xf32>
    %160 = math.exp %159 : vector<2x16x16xf32>
    %cst_59 = arith.constant dense<0.000000e+00> : vector<2x16xf32>
    %161 = vector.multi_reduction <add>, %160, %cst_59 [2] : vector<2x16x16xf32> to vector<2x16xf32>
    %162 = vector.shape_cast %161 : vector<2x16xf32> to vector<2x16x1xf32>
    %163 = tpu.reciprocal %162 {approx = true} : vector<2x16x1xf32> -> vector<2x16x1xf32>
    %164 = vector.broadcast %163 : vector<2x16x1xf32> to vector<2x16x16xf32>
    %165 = arith.mulf %160, %164 : vector<2x16x16xf32>
    %166 = arith.truncf %165 : vector<2x16x16xf32> to vector<2x16x16xbf16>
    "tpu.trace_start"() <{level = 10 : i32, message = "bqk,bkd->bqd"}> : () -> ()
    %cst_60 = arith.constant dense<0.000000e+00> : vector<2x16x128xf32>
    %167 = tpu.matmul %166, %40, %cst_60 {dimension_numbers = #tpu.dot_dimension_numbers<[2], [1], [1], [2], [0, 0, 0, 1, 1, 2], [0], [0]>} : vector<2x16x16xbf16>, vector<2x16x128xbf16>, vector<2x16x128xf32> -> vector<2x16x128xf32>
    "tpu.trace_stop"() : () -> ()
    %168 = vector.broadcast %145 : vector<1x1x128xf32> to vector<2x16x128xf32>
    %169 = arith.mulf %167, %168 : vector<2x16x128xf32>
    %170 = arith.addf %138, %169 : vector<2x16x128xf32>
    %171 = vector.shape_cast %170 : vector<2x16x128xf32> to vector<32x128xf32>
    %172 = arith.truncf %171 : vector<32x128xf32> to vector<32x128xbf16>
    %173 = arith.truncf %4 : vector<128x128xf32> to vector<128x128xbf16>
    %cst_61 = arith.constant dense<0.000000e+00> : vector<32x128xf32>
    %174 = tpu.matmul %172, %173, %cst_61 {dimension_numbers = #tpu.dot_dimension_numbers<[1], [0], [0], [1], [0, 0, 1, 1], [], []>} : vector<32x128xbf16>, vector<128x128xbf16>, vector<32x128xf32> -> vector<32x128xf32>
    %175 = vector.shape_cast %174 : vector<32x128xf32> to vector<2x16x128xf32>
    %176 = arith.addf %19, %175 : vector<2x16x128xf32>
    %cst_62 = arith.constant dense<0.000000e+00> : vector<2x16xf32>
    %177 = vector.multi_reduction <add>, %176, %cst_62 [2] : vector<2x16x128xf32> to vector<2x16xf32>
    %178 = vector.shape_cast %177 : vector<2x16xf32> to vector<2x16x1xf32>
    %cst_63 = arith.constant 1.280000e+02 : f32
    %179 = vector.broadcast %cst_63 : f32 to vector<2x16x1xf32>
    %180 = arith.divf %178, %179 : vector<2x16x1xf32>
    %181 = vector.broadcast %180 : vector<2x16x1xf32> to vector<2x16x128xf32>
    %182 = arith.subf %176, %181 : vector<2x16x128xf32>
    %183 = arith.mulf %182, %182 : vector<2x16x128xf32>
    %cst_64 = arith.constant dense<0.000000e+00> : vector<2x16xf32>
    %184 = vector.multi_reduction <add>, %183, %cst_64 [2] : vector<2x16x128xf32> to vector<2x16xf32>
    %185 = vector.shape_cast %184 : vector<2x16xf32> to vector<2x16x1xf32>
    %cst_65 = arith.constant 1.280000e+02 : f32
    %186 = vector.broadcast %cst_65 : f32 to vector<2x16x1xf32>
    %187 = arith.divf %185, %186 : vector<2x16x1xf32>
    %188 = vector.broadcast %180 : vector<2x16x1xf32> to vector<2x16x128xf32>
    %189 = arith.subf %176, %188 : vector<2x16x128xf32>
    %cst_66 = arith.constant 9.99999974E-6 : f32
    %190 = vector.broadcast %cst_66 : f32 to vector<2x16x1xf32>
    %191 = arith.addf %187, %190 : vector<2x16x1xf32>
    %192 = math.rsqrt %191 : vector<2x16x1xf32>
    %193 = vector.broadcast %192 : vector<2x16x1xf32> to vector<2x16x128xf32>
    %194 = arith.mulf %189, %193 : vector<2x16x128xf32>
    %195 = vector.shape_cast %9 : vector<1x128xf32> to vector<1x1x128xf32>
    %196 = vector.broadcast %195 : vector<1x1x128xf32> to vector<2x16x128xf32>
    %197 = arith.mulf %194, %196 : vector<2x16x128xf32>
    %198 = vector.shape_cast %10 : vector<1x128xf32> to vector<1x1x128xf32>
    %199 = vector.broadcast %198 : vector<1x1x128xf32> to vector<2x16x128xf32>
    %200 = arith.addf %197, %199 : vector<2x16x128xf32>
    %201 = vector.shape_cast %200 : vector<2x16x128xf32> to vector<32x128xf32>
    %202 = arith.truncf %201 : vector<32x128xf32> to vector<32x128xbf16>
    %203 = arith.truncf %5 : vector<128x128xf32> to vector<128x128xbf16>
    %cst_67 = arith.constant dense<0.000000e+00> : vector<32x128xf32>
    %204 = tpu.matmul %202, %203, %cst_67 {dimension_numbers = #tpu.dot_dimension_numbers<[1], [0], [0], [1], [0, 0, 1, 1], [], []>} : vector<32x128xbf16>, vector<128x128xbf16>, vector<32x128xf32> -> vector<32x128xf32>
    %205 = vector.broadcast %6 : vector<1x128xf32> to vector<32x128xf32>
    %206 = arith.addf %204, %205 : vector<32x128xf32>
    %cst_68 = arith.constant 0.000000e+00 : f32
    %207 = vector.broadcast %cst_68 : f32 to vector<32x128xf32>
    %208 = arith.maximumf %206, %207 : vector<32x128xf32>
    %209 = arith.truncf %208 : vector<32x128xf32> to vector<32x128xbf16>
    %210 = arith.truncf %7 : vector<128x128xf32> to vector<128x128xbf16>
    %cst_69 = arith.constant dense<0.000000e+00> : vector<32x128xf32>
    %211 = tpu.matmul %209, %210, %cst_69 {dimension_numbers = #tpu.dot_dimension_numbers<[1], [0], [0], [1], [0, 0, 1, 1], [], []>} : vector<32x128xbf16>, vector<128x128xbf16>, vector<32x128xf32> -> vector<32x128xf32>
    %212 = vector.broadcast %8 : vector<1x128xf32> to vector<32x128xf32>
    %213 = arith.addf %211, %212 : vector<32x128xf32>
    %214 = vector.shape_cast %213 : vector<32x128xf32> to vector<2x16x128xf32>
    %215 = arith.addf %200, %214 : vector<2x16x128xf32>
    %cst_70 = arith.constant dense<0.000000e+00> : vector<2x16xf32>
    %216 = vector.multi_reduction <add>, %215, %cst_70 [2] : vector<2x16x128xf32> to vector<2x16xf32>
    %217 = vector.shape_cast %216 : vector<2x16xf32> to vector<2x16x1xf32>
    %cst_71 = arith.constant 1.280000e+02 : f32
    %218 = vector.broadcast %cst_71 : f32 to vector<2x16x1xf32>
    %219 = arith.divf %217, %218 : vector<2x16x1xf32>
    %220 = vector.broadcast %219 : vector<2x16x1xf32> to vector<2x16x128xf32>
    %221 = arith.subf %215, %220 : vector<2x16x128xf32>
    %222 = arith.mulf %221, %221 : vector<2x16x128xf32>
    %cst_72 = arith.constant dense<0.000000e+00> : vector<2x16xf32>
    %223 = vector.multi_reduction <add>, %222, %cst_72 [2] : vector<2x16x128xf32> to vector<2x16xf32>
    %224 = vector.shape_cast %223 : vector<2x16xf32> to vector<2x16x1xf32>
    %cst_73 = arith.constant 1.280000e+02 : f32
    %225 = vector.broadcast %cst_73 : f32 to vector<2x16x1xf32>
    %226 = arith.divf %224, %225 : vector<2x16x1xf32>
    %227 = vector.broadcast %219 : vector<2x16x1xf32> to vector<2x16x128xf32>
    %228 = arith.subf %215, %227 : vector<2x16x128xf32>
    %cst_74 = arith.constant 9.99999974E-6 : f32
    %229 = vector.broadcast %cst_74 : f32 to vector<2x16x1xf32>
    %230 = arith.addf %226, %229 : vector<2x16x1xf32>
    %231 = math.rsqrt %230 : vector<2x16x1xf32>
    %232 = vector.broadcast %231 : vector<2x16x1xf32> to vector<2x16x128xf32>
    %233 = arith.mulf %228, %232 : vector<2x16x128xf32>
    %234 = vector.shape_cast %11 : vector<1x128xf32> to vector<1x1x128xf32>
    %235 = vector.broadcast %234 : vector<1x1x128xf32> to vector<2x16x128xf32>
    %236 = arith.mulf %233, %235 : vector<2x16x128xf32>
    %237 = vector.shape_cast %12 : vector<1x128xf32> to vector<1x1x128xf32>
    %238 = vector.broadcast %237 : vector<1x1x128xf32> to vector<2x16x128xf32>
    %239 = arith.addf %236, %238 : vector<2x16x128xf32>
    %c0_75 = arith.constant 0 : index
    %c0_76 = arith.constant 0 : index
    %c0_77 = arith.constant 0 : index
    %240 = vector.load %arg15[%c0_75, %c0_76, %c0_77] : memref<2x16x128xf32, #tpu.memory_space<vmem>>, vector<2x16x128xf32>
    tpu.vector_store %arg15[%c0_75, %c0_76, %c0_77], %239 {strides = array<i32>} : memref<2x16x128xf32, #tpu.memory_space<vmem>>, vector<2x16x128xf32>,
    return
  }
}

</mosaic_0001>

<llo_original>
// kernel: tpu_custom_call.1
$region0: #{tpu_custom_call.1}
  #allocation0 [shape = 'u32[]', space=smem, size = 0x4, offset = 0x4, fixed_abs, tag = 'smem constant byte address 0x4 - core index']
  #allocation1 [shape = 'u32[144,128]{1,0:T(1,128)}', space=vmem, size = 0x12000, scoped, tag = 'internal scratch']
  %s0 = inlined_call_operand.hbm [shape: f32[2,16,32], index: 0, kind: input, shape index: {}]
  %s1 = inlined_call_operand.vmem [shape: s32[2,1], index: 1, kind: input, shape index: {}]
  %s2 = inlined_call_operand.hbm [shape: f32[32,128], index: 2, kind: input, shape index: {}]
  %s3 = inlined_call_operand.hbm [shape: f32[128,128], index: 3, kind: input, shape index: {}]
  %s4 = inlined_call_operand.hbm [shape: f32[128,128], index: 4, kind: input, shape index: {}]
  %s5 = inlined_call_operand.hbm [shape: f32[128,128], index: 5, kind: input, shape index: {}]
  %s6 = inlined_call_operand.hbm [shape: f32[128,128], index: 6, kind: input, shape index: {}]
  %s7 = inlined_call_operand.hbm [shape: f32[128,128], index: 7, kind: input, shape index: {}]
  %s8 = inlined_call_operand.vmem [shape: f32[1,128], index: 8, kind: input, shape index: {}]
  %s9 = inlined_call_operand.hbm [shape: f32[128,128], index: 9, kind: input, shape index: {}]
  %s10 = inlined_call_operand.vmem [shape: f32[1,128], index: 10, kind: input, shape index: {}]
  %s11 = inlined_call_operand.vmem [shape: f32[1,128], index: 11, kind: input, shape index: {}]
  %s12 = inlined_call_operand.vmem [shape: f32[1,128], index: 12, kind: input, shape index: {}]
  %s13 = inlined_call_operand.vmem [shape: f32[1,128], index: 13, kind: input, shape index: {}]
  %s14 = inlined_call_operand.vmem [shape: f32[1,128], index: 14, kind: input, shape index: {}]
  %s15 = inlined_call_operand.hbm [shape: f32[2,16,128], index: 15, kind: output, shape index: {}]
  %s16 = sld [smem:[#allocation0]]
  $region102: #{tpu_custom_call.1} parent=0
    _
  %s18 = ssub.s32 1, %s16
  %s19 = scalar_select 0, %s18, %s16
  $region1: #{tpu_custom_call.1} parent=0
    #allocation2 [shape = 'u8[16384]{0}', space=vmem, size = 0x4000, scoped, tag = 'input window, operand 0, single buffered']
    #allocation3 [shape = 's32[1]{0}', space=sflag, size = 0x4, scoped, tag = 'scoped memory for tpu_custom_call.1']
    #allocation4 [shape = 's32[1]{0}', space=sflag, size = 0x4, scoped, tag = 'scoped memory for tpu_custom_call.1']
    #allocation5 [shape = 'u8[16384]{0}', space=vmem, size = 0x4000, scoped, tag = 'input window, operand 2, single buffered']
    #allocation6 [shape = 's32[1]{0}', space=sflag, size = 0x4, scoped, tag = 'scoped memory for tpu_custom_call.1']
    #allocation7 [shape = 'u8[65536]{0}', space=vmem, size = 0x10000, scoped, tag = 'input window, operand 3, single buffered']
    #allocation8 [shape = 'u8[65536]{0}', space=vmem, size = 0x10000, scoped, tag = 'input window, operand 4, single buffered']
    #allocation9 [shape = 's32[1]{0}', space=sflag, size = 0x4, scoped, tag = 'scoped memory for tpu_custom_call.1']
    #allocation10 [shape = 'u8[65536]{0}', space=vmem, size = 0x10000, scoped, tag = 'input window, operand 5, single buffered']
    #allocation11 [shape = 'u8[65536]{0}', space=vmem, size = 0x10000, scoped, tag = 'input window, operand 6, single buffered']
    #allocation12 [shape = 's32[1]{0}', space=sflag, size = 0x4, scoped, tag = 'scoped memory for tpu_custom_call.1']
    #allocation13 [shape = 'u8[65536]{0}', space=vmem, size = 0x10000, scoped, tag = 'input window, operand 7, single buffered']
    #allocation14 [shape = 'u8[65536]{0}', space=vmem, size = 0x10000, scoped, tag = 'input window, operand 9, single buffered']
    #allocation15 [shape = 's32[1]{0}', space=sflag, size = 0x4, scoped, tag = 'scoped memory for tpu_custom_call.1']
    #allocation16 [shape = 'u8[16384]{0}', space=vmem, size = 0x4000, scoped, tag = 'output window, operand 0, single buffered']
    %20 = vsyncpa [#allocation3], 0
    %21 = vsyncpa [#allocation6], 0
    %22 = vsyncpa [#allocation9], 0
    %23 = vsyncpa [#allocation12], 0
    %24 = vsyncpa [#allocation15], 0
    %25 = vsyncpa [#allocation4], 0
    // Predicated region
    $region2: #{tpu_custom_call.1} parent=1 // pred_check
      _
    $region3: #{tpu_custom_call.1} parent=1 // pred_check_branch
      %27 = sbr.rel (0) target = $region5
    $region4: #{tpu_custom_call.1} parent=1 // pred_region
      %s29 = ssub.s32 512, 512
      %30 = vsyncadd [#allocation3], %s29
      %s31 = sshll.u32 [#allocation2], 4
      %s32 = int_to_ptr.vmem [resolvable:$true] %s31
      %37 = dma.hbm_to_vmem [thread:$0]  %s0, 512, %s32, [#allocation3], 128, 128, 8
    $region5: #{tpu_custom_call.1} parent=1 // pred_fallthru
      _
    // Predicated region
    $region6: #{tpu_custom_call.1} parent=1 // pred_check
      _
    $region7: #{tpu_custom_call.1} parent=1 // pred_check_branch
      %39 = sbr.rel (0) target = $region9
    $region8: #{tpu_custom_call.1} parent=1 // pred_region
      _
    $region9: #{tpu_custom_call.1} parent=1 // pred_fallthru
      _
    // Predicated region
    $region10: #{tpu_custom_call.1} parent=1 // pred_check
      _
    $region11: #{tpu_custom_call.1} parent=1 // pred_check_branch
      %41 = sbr.rel (0) target = $region13
    $region12: #{tpu_custom_call.1} parent=1 // pred_region
      %s43 = ssub.s32 512, 512
      %44 = vsyncadd [#allocation6], %s43
      %s45 = sshll.u32 [#allocation5], 4
      %s46 = int_to_ptr.vmem [resolvable:$true] %s45
      %51 = dma.hbm_to_vmem [thread:$0]  %s2, 512, %s46, [#allocation6], 128, 128, 8
    $region13: #{tpu_custom_call.1} parent=1 // pred_fallthru
      _
    // Predicated region
    $region14: #{tpu_custom_call.1} parent=1 // pred_check
      _
    $region15: #{tpu_custom_call.1} parent=1 // pred_check_branch
      %53 = sbr.rel (0) target = $region17
    $region16: #{tpu_custom_call.1} parent=1 // pred_region
      %s55 = ssub.s32 2048, 2048
      %56 = vsyncadd [#allocation6], %s55
      %s57 = sshll.u32 [#allocation7], 4
      %s58 = int_to_ptr.vmem [resolvable:$true] %s57
      %63 = dma.hbm_to_vmem [thread:$0]  %s3, 2048, %s58, [#allocation6], 128, 128, 8
    $region17: #{tpu_custom_call.1} parent=1 // pred_fallthru
      _
    // Predicated region
    $region18: #{tpu_custom_call.1} parent=1 // pred_check
      _
    $region19: #{tpu_custom_call.1} parent=1 // pred_check_branch
      %65 = sbr.rel (0) target = $region21
    $region20: #{tpu_custom_call.1} parent=1 // pred_region
      %s67 = ssub.s32 2048, 2048
      %68 = vsyncadd [#allocation9], %s67
      %s69 = sshll.u32 [#allocation8], 4
      %s70 = int_to_ptr.vmem [resolvable:$true] %s69
      %75 = dma.hbm_to_vmem [thread:$0]  %s4, 2048, %s70, [#allocation9], 128, 128, 8
    $region21: #{tpu_custom_call.1} parent=1 // pred_fallthru
      _
    // Predicated region
    $region22: #{tpu_custom_call.1} parent=1 // pred_check
      _
    $region23: #{tpu_custom_call.1} parent=1 // pred_check_branch
      %77 = sbr.rel (0) target = $region25
    $region24: #{tpu_custom_call.1} parent=1 // pred_region
      %s79 = ssub.s32 2048, 2048
      %80 = vsyncadd [#allocation9], %s79
      %s81 = sshll.u32 [#allocation10], 4
      %s82 = int_to_ptr.vmem [resolvable:$true] %s81
      %87 = dma.hbm_to_vmem [thread:$0]  %s5, 2048, %s82, [#allocation9], 128, 128, 8
    $region25: #{tpu_custom_call.1} parent=1 // pred_fallthru
      _
    // Predicated region
    $region26: #{tpu_custom_call.1} parent=1 // pred_check
      _
    $region27: #{tpu_custom_call.1} parent=1 // pred_check_branch
      %89 = sbr.rel (0) target = $region29
    $region28: #{tpu_custom_call.1} parent=1 // pred_region
      %s91 = ssub.s32 2048, 2048
      %92 = vsyncadd [#allocation12], %s91
      %s93 = sshll.u32 [#allocation11], 4
      %s94 = int_to_ptr.vmem [resolvable:$true] %s93
      %99 = dma.hbm_to_vmem [thread:$0]  %s6, 2048, %s94, [#allocation12], 128, 128, 8
    $region29: #{tpu_custom_call.1} parent=1 // pred_fallthru
      _
    // Predicated region
    $region30: #{tpu_custom_call.1} parent=1 // pred_check
      _
    $region31: #{tpu_custom_call.1} parent=1 // pred_check_branch
      %101 = sbr.rel (0) target = $region33
    $region32: #{tpu_custom_call.1} parent=1 // pred_region
      %s103 = ssub.s32 2048, 2048
      %104 = vsyncadd [#allocation12], %s103
      %s105 = sshll.u32 [#allocation13], 4
      %s106 = int_to_ptr.vmem [resolvable:$true] %s105
      %111 = dma.hbm_to_vmem [thread:$0]  %s7, 2048, %s106, [#allocation12], 128, 128, 8
    $region33: #{tpu_custom_call.1} parent=1 // pred_fallthru
      _
    // Predicated region
    $region34: #{tpu_custom_call.1} parent=1 // pred_check
      _
    $region35: #{tpu_custom_call.1} parent=1 // pred_check_branch
      %113 = sbr.rel (0) target = $region37
    $region36: #{tpu_custom_call.1} parent=1 // pred_region
      _
    $region37: #{tpu_custom_call.1} parent=1 // pred_fallthru
      _
    // Predicated region
    $region38: #{tpu_custom_call.1} parent=1 // pred_check
      _
    $region39: #{tpu_custom_call.1} parent=1 // pred_check_branch
      %115 = sbr.rel (0) target = $region41
    $region40: #{tpu_custom_call.1} parent=1 // pred_region
      %s117 = ssub.s32 2048, 2048
      %118 = vsyncadd [#allocation15], %s117
      %s119 = sshll.u32 [#allocation14], 4
      %s120 = int_to_ptr.vmem [resolvable:$true] %s119
      %125 = dma.hbm_to_vmem [thread:$0]  %s9, 2048, %s120, [#allocation15], 128, 128, 8
    $region41: #{tpu_custom_call.1} parent=1 // pred_fallthru
      _
    // Predicated region
    $region42: #{tpu_custom_call.1} parent=1 // pred_check
      _
    $region43: #{tpu_custom_call.1} parent=1 // pred_check_branch
      %127 = sbr.rel (0) target = $region45
    $region44: #{tpu_custom_call.1} parent=1 // pred_region
      _
    $region45: #{tpu_custom_call.1} parent=1 // pred_fallthru
      _
    // Predicated region
    $region46: #{tpu_custom_call.1} parent=1 // pred_check
      _
    $region47: #{tpu_custom_call.1} parent=1 // pred_check_branch
      %129 = sbr.rel (0) target = $region49
    $region48: #{tpu_custom_call.1} parent=1 // pred_region
      _
    $region49: #{tpu_custom_call.1} parent=1 // pred_fallthru
      _
    // Predicated region
    $region50: #{tpu_custom_call.1} parent=1 // pred_check
      _
    $region51: #{tpu_custom_call.1} parent=1 // pred_check_branch
      %131 = sbr.rel (0) target = $region53
    $region52: #{tpu_custom_call.1} parent=1 // pred_region
      _
    $region53: #{tpu_custom_call.1} parent=1 // pred_fallthru
      _
    // Predicated region
    $region54: #{tpu_custom_call.1} parent=1 // pred_check
      _
    $region55: #{tpu_custom_call.1} parent=1 // pred_check_branch
      %133 = sbr.rel (0) target = $region57
    $region56: #{tpu_custom_call.1} parent=1 // pred_region
      _
    $region57: #{tpu_custom_call.1} parent=1 // pred_fallthru
      _
    // Predicated region
    $region58: #{tpu_custom_call.1} parent=1 // pred_check
      _
    $region59: #{tpu_custom_call.1} parent=1 // pred_check_branch
      %135 = sbr.rel (0) target = $region61
    $region60: #{tpu_custom_call.1} parent=1 // pred_region
      _
    $region61: #{tpu_custom_call.1} parent=1 // pred_fallthru
      _
    // Predicated region
    $region62: #{tpu_custom_call.1} parent=1 // pred_check
      _
    $region63: #{tpu_custom_call.1} parent=1 // pred_check_branch
      %137 = sbr.rel (0) target = $region65
    $region64: #{tpu_custom_call.1} parent=1 // pred_region
      %138 = dma.done [#allocation3], 512
    $region65: #{tpu_custom_call.1} parent=1 // pred_fallthru
      _
    // Predicated region
    $region66: #{tpu_custom_call.1} parent=1 // pred_check
      _
    $region67: #{tpu_custom_call.1} parent=1 // pred_check_branch
      %140 = sbr.rel (0) target = $region69
    $region68: #{tpu_custom_call.1} parent=1 // pred_region
      %141 = dma.done [#allocation6], 512
    $region69: #{tpu_custom_call.1} parent=1 // pred_fallthru
      _
    // Predicated region
    $region70: #{tpu_custom_call.1} parent=1 // pred_check
      _
    $region71: #{tpu_custom_call.1} parent=1 // pred_check_branch
      %143 = sbr.rel (0) target = $region73
    $region72: #{tpu_custom_call.1} parent=1 // pred_region
      %144 = dma.done [#allocation6], 2048
    $region73: #{tpu_custom_call.1} parent=1 // pred_fallthru
      _
    // Predicated region
    $region74: #{tpu_custom_call.1} parent=1 // pred_check
      _
    $region75: #{tpu_custom_call.1} parent=1 // pred_check_branch
      %146 = sbr.rel (0) target = $region77
    $region76: #{tpu_custom_call.1} parent=1 // pred_region
      %147 = dma.done [#allocation9], 2048
    $region77: #{tpu_custom_call.1} parent=1 // pred_fallthru
      _
    // Predicated region
    $region78: #{tpu_custom_call.1} parent=1 // pred_check
      _
    $region79: #{tpu_custom_call.1} parent=1 // pred_check_branch
      %149 = sbr.rel (0) target = $region81
    $region80: #{tpu_custom_call.1} parent=1 // pred_region
      %150 = dma.done [#allocation9], 2048
    $region81: #{tpu_custom_call.1} parent=1 // pred_fallthru
      _
    // Predicated region
    $region82: #{tpu_custom_call.1} parent=1 // pred_check
      _
    $region83: #{tpu_custom_call.1} parent=1 // pred_check_branch
      %152 = sbr.rel (0) target = $region85
    $region84: #{tpu_custom_call.1} parent=1 // pred_region
      %153 = dma.done [#allocation12], 2048
    $region85: #{tpu_custom_call.1} parent=1 // pred_fallthru
      _
    // Predicated region
    $region86: #{tpu_custom_call.1} parent=1 // pred_check
      _
    $region87: #{tpu_custom_call.1} parent=1 // pred_check_branch
      %155 = sbr.rel (0) target = $region89
    $region88: #{tpu_custom_call.1} parent=1 // pred_region
      %156 = dma.done [#allocation12], 2048
    $region89: #{tpu_custom_call.1} parent=1 // pred_fallthru
      _
    // Predicated region
    $region90: #{tpu_custom_call.1} parent=1 // pred_check
      _
    $region91: #{tpu_custom_call.1} parent=1 // pred_check_branch
      %158 = sbr.rel (0) target = $region93
    $region92: #{tpu_custom_call.1} parent=1 // pred_region
      %159 = dma.done [#allocation15], 2048
    $region93: #{tpu_custom_call.1} parent=1 // pred_fallthru
      _
    %v161 = vld [vmem:[#allocation5] sm:$0xff]
    %v162 = vld [vmem:[#allocation5 + $0x8] sm:$0xff]
    %v163 = vld [vmem:[#allocation5 + $0x10] sm:$0xff]
    %v164 = vld [vmem:[#allocation5 + $0x18] sm:$0xff]
    %v165 = vld [vmem:[#allocation7] sm:$0xff]
    %v166 = vld [vmem:[#allocation7 + $0x8] sm:$0xff]
    %v167 = vld [vmem:[#allocation7 + $0x10] sm:$0xff]
    %v168 = vld [vmem:[#allocation7 + $0x18] sm:$0xff]
    %v169 = vld [vmem:[#allocation7 + $0x20] sm:$0xff]
    %v170 = vld [vmem:[#allocation7 + $0x28] sm:$0xff]
    %v171 = vld [vmem:[#allocation7 + $0x30] sm:$0xff]
    %v172 = vld [vmem:[#allocation7 + $0x38] sm:$0xff]
    %v173 = vld [vmem:[#allocation7 + $0x40] sm:$0xff]
    %v174 = vld [vmem:[#allocation7 + $0x48] sm:$0xff]
    %v175 = vld [vmem:[#allocation7 + $0x50] sm:$0xff]
    %v176 = vld [vmem:[#allocation7 + $0x58] sm:$0xff]
    %v177 = vld [vmem:[#allocation7 + $0x60] sm:$0xff]
    %v178 = vld [vmem:[#allocation7 + $0x68] sm:$0xff]
    %v179 = vld [vmem:[#allocation7 + $0x70] sm:$0xff]
    %v180 = vld [vmem:[#allocation7 + $0x78] sm:$0xff]
    %v181 = vld [vmem:[#allocation8] sm:$0xff]
    %v182 = vld [vmem:[#allocation8 + $0x8] sm:$0xff]
    %v183 = vld [vmem:[#allocation8 + $0x10] sm:$0xff]
    %v184 = vld [vmem:[#allocation8 + $0x18] sm:$0xff]
    %v185 = vld [vmem:[#allocation8 + $0x20] sm:$0xff]
    %v186 = vld [vmem:[#allocation8 + $0x28] sm:$0xff]
    %v187 = vld [vmem:[#allocation8 + $0x30] sm:$0xff]
    %v188 = vld [vmem:[#allocation8 + $0x38] sm:$0xff]
    %v189 = vld [vmem:[#allocation8 + $0x40] sm:$0xff]
    %v190 = vld [vmem:[#allocation8 + $0x48] sm:$0xff]
    %v191 = vld [vmem:[#allocation8 + $0x50] sm:$0xff]
    %v192 = vld [vmem:[#allocation8 + $0x58] sm:$0xff]
    %v193 = vld [vmem:[#allocation8 + $0x60] sm:$0xff]
    %v194 = vld [vmem:[#allocation8 + $0x68] sm:$0xff]
    %v195 = vld [vmem:[#allocation8 + $0x70] sm:$0xff]
    %v196 = vld [vmem:[#allocation8 + $0x78] sm:$0xff]
    %v197 = vld [vmem:[#allocation10] sm:$0xff]
    %v198 = vld [vmem:[#allocation10 + $0x8] sm:$0xff]
    %v199 = vld [vmem:[#allocation10 + $0x10] sm:$0xff]
    %v200 = vld [vmem:[#allocation10 + $0x18] sm:$0xff]
    %v201 = vld [vmem:[#allocation10 + $0x20] sm:$0xff]
    %v202 = vld [vmem:[#allocation10 + $0x28] sm:$0xff]
    %v203 = vld [vmem:[#allocation10 + $0x30] sm:$0xff]
    %v204 = vld [vmem:[#allocation10 + $0x38] sm:$0xff]
    %v205 = vld [vmem:[#allocation10 + $0x40] sm:$0xff]
    %v206 = vld [vmem:[#allocation10 + $0x48] sm:$0xff]
    %v207 = vld [vmem:[#allocation10 + $0x50] sm:$0xff]
    %v208 = vld [vmem:[#allocation10 + $0x58] sm:$0xff]
    %v209 = vld [vmem:[#allocation10 + $0x60] sm:$0xff]
    %v210 = vld [vmem:[#allocation10 + $0x68] sm:$0xff]
    %v211 = vld [vmem:[#allocation10 + $0x70] sm:$0xff]
    %v212 = vld [vmem:[#allocation10 + $0x78] sm:$0xff]
    %v213 = vld [vmem:[#allocation11] sm:$0xff]
    %v214 = vld [vmem:[#allocation11 + $0x8] sm:$0xff]
    %v215 = vld [vmem:[#allocation11 + $0x10] sm:$0xff]
    %v216 = vld [vmem:[#allocation11 + $0x18] sm:$0xff]
    %v217 = vld [vmem:[#allocation11 + $0x20] sm:$0xff]
    %v218 = vld [vmem:[#allocation11 + $0x28] sm:$0xff]
    %v219 = vld [vmem:[#allocation11 + $0x30] sm:$0xff]
    %v220 = vld [vmem:[#allocation11 + $0x38] sm:$0xff]
    %v221 = vld [vmem:[#allocation11 + $0x40] sm:$0xff]
    %v222 = vld [vmem:[#allocation11 + $0x48] sm:$0xff]
    %v223 = vld [vmem:[#allocation11 + $0x50] sm:$0xff]
    %v224 = vld [vmem:[#allocation11 + $0x58] sm:$0xff]
    %v225 = vld [vmem:[#allocation11 + $0x60] sm:$0xff]
    %v226 = vld [vmem:[#allocation11 + $0x68] sm:$0xff]
    %v227 = vld [vmem:[#allocation11 + $0x70] sm:$0xff]
    %v228 = vld [vmem:[#allocation11 + $0x78] sm:$0xff]
    %v229 = vld [vmem:[#allocation13] sm:$0xff]
    %v230 = vld [vmem:[#allocation13 + $0x8] sm:$0xff]
    %v231 = vld [vmem:[#allocation13 + $0x10] sm:$0xff]
    %v232 = vld [vmem:[#allocation13 + $0x18] sm:$0xff]
    %v233 = vld [vmem:[#allocation13 + $0x20] sm:$0xff]
    %v234 = vld [vmem:[#allocation13 + $0x28] sm:$0xff]
    %v235 = vld [vmem:[#allocation13 + $0x30] sm:$0xff]
    %v236 = vld [vmem:[#allocation13 + $0x38] sm:$0xff]
    %v237 = vld [vmem:[#allocation13 + $0x40] sm:$0xff]
    %v238 = vld [vmem:[#allocation13 + $0x48] sm:$0xff]
    %v239 = vld [vmem:[#allocation13 + $0x50] sm:$0xff]
    %v240 = vld [vmem:[#allocation13 + $0x58] sm:$0xff]
    %v241 = vld [vmem:[#allocation13 + $0x60] sm:$0xff]
    %v242 = vld [vmem:[#allocation13 + $0x68] sm:$0xff]
    %v243 = vld [vmem:[#allocation13 + $0x70] sm:$0xff]
    %v244 = vld [vmem:[#allocation13 + $0x78] sm:$0xff]
    %v245 = vld [vmem:[%s8] sm:$0x1]
    %v246 = vld [vmem:[#allocation14] sm:$0xff]
    %v247 = vld [vmem:[#allocation14 + $0x8] sm:$0xff]
    %v248 = vld [vmem:[#allocation14 + $0x10] sm:$0xff]
    %v249 = vld [vmem:[#allocation14 + $0x18] sm:$0xff]
    %v250 = vld [vmem:[#allocation14 + $0x20] sm:$0xff]
    %v251 = vld [vmem:[#allocation14 + $0x28] sm:$0xff]
    %v252 = vld [vmem:[#allocation14 + $0x30] sm:$0xff]
    %v253 = vld [vmem:[#allocation14 + $0x38] sm:$0xff]
    %v254 = vld [vmem:[#allocation14 + $0x40] sm:$0xff]
    %v255 = vld [vmem:[#allocation14 + $0x48] sm:$0xff]
    %v256 = vld [vmem:[#allocation14 + $0x50] sm:$0xff]
    %v257 = vld [vmem:[#allocation14 + $0x58] sm:$0xff]
    %v258 = vld [vmem:[#allocation14 + $0x60] sm:$0xff]
    %v259 = vld [vmem:[#allocation14 + $0x68] sm:$0xff]
    %v260 = vld [vmem:[#allocation14 + $0x70] sm:$0xff]
    %v261 = vld [vmem:[#allocation14 + $0x78] sm:$0xff]
    %v262 = vld [vmem:[%s10] sm:$0x1]
    %v263 = vld [vmem:[%s11] sm:$0x1]
    %v264 = vld [vmem:[%s12] sm:$0x1]
    %v265 = vld [vmem:[%s13] sm:$0x1]
    %v266 = vld [vmem:[%s14] sm:$0x1]
    %v267 = vld [vmem:[#allocation2] sm:$0xff]
    %v268 = vld [vmem:[#allocation2 + $0x8] sm:$0xff]
    %v269 = vld [vmem:[#allocation2 + $0x10] sm:$0xff]
    %v270 = vld [vmem:[#allocation2 + $0x18] sm:$0xff]
    %v271 = vld [vmem:[%s1] sm:$0x3]
    %v272 = vpack.c.bf16 %v268, %v267
    %v273 = vpack.c.bf16 %v270, %v269
    %v274 = vpack.c.bf16 %v162, %v161
    %v275 = vpack.c.bf16 %v164, %v163
    %vm276 = vcmask 261120
    %v278 = vsel %vm276, %v272, 0
    %v281 = vsel %vm276, %v273, 0
    %283 = vmatprep.subr.bf16.mxu0 0
    %284 = vmatpush1.bf16.msra.mxu0 %v274
    %285 = vmatprep.subr.bf16.mxu0 0
    %286 = vmatpush1.bf16.msra.mxu0 %v275
    %287 = vmatprep.subr.bf16.mxu0 0
    %288 = vmatpush1.bf16.msra.mxu0 0
    %289 = vmatprep.subr.bf16.mxu0 0
    %290 = vmatpush1.bf16.msra.mxu0 0
    %291 = vmatprep.subr.bf16.mxu0 0
    %292 = vmatpush1.bf16.msra.mxu0 0
    %293 = vmatprep.subr.bf16.mxu0 0
    %294 = vmatpush1.bf16.msra.mxu0 0
    %295 = vmatprep.subr.bf16.mxu0 0
    %296 = vmatpush1.bf16.msra.mxu0 0
    %297 = vmatprep.subr.bf16.mxu0 0
    %298 = vmatpush1.bf16.msra.mxu0 0
    %299 = vmatprep.subr.bf16.mxu0 0
    %300 = vmatpush1.bf16.msra.mxu0 0
    %301 = vmatprep.subr.bf16.mxu0 0
    %302 = vmatpush1.bf16.msra.mxu0 0
    %303 = vmatprep.subr.bf16.mxu0 0
    %304 = vmatpush1.bf16.msra.mxu0 0
    %305 = vmatprep.subr.bf16.mxu0 0
    %306 = vmatpush1.bf16.msra.mxu0 0
    %307 = vmatprep.subr.bf16.mxu0 0
    %308 = vmatpush1.bf16.msra.mxu0 0
    %309 = vmatprep.subr.bf16.mxu0 0
    %310 = vmatpush1.bf16.msra.mxu0 0
    %311 = vmatprep.subr.bf16.mxu0 0
    %312 = vmatpush1.bf16.msra.mxu0 0
    %313 = vmatprep.subr.bf16.mxu0 0
    %314 = vmatpush1.bf16.msra.mxu0 0
    %315 = vmatprep.mubr.bf16.mxu0 0
    %316 = vmatmul.mubr.bf16.gmra.mrb[0].mxu0 %v278
    %v317 = vpop.f32.mrb[0].mxu0
    %v318 = vadd.f32 0.0, %v317
    %v319 = vpop.f32.mrb[0].mxu0
    %v320 = vpop.f32.mrb[0].mxu0
    %v321 = vadd.f32 0.0, %v320
    %v322 = vpop.f32.mrb[0].mxu0
    %323 = vmatprep.mubr.bf16.mxu0 0
    %324 = vmatmul.mubr.bf16.gmra.mrb[0].mxu0 %v281
    %v325 = vpop.f32.mrb[0].mxu0
    %v326 = vadd.f32 0.0, %v325
    %v327 = vpop.f32.mrb[0].mxu0
    %v328 = vpop.f32.mrb[0].mxu0
    %v329 = vadd.f32 0.0, %v328
    %v330 = vpop.f32.mrb[0].mxu0
    %331 = vdwg.mxu0
    %v332 = vlaneseq
    %v333 = vand.u32 %v332, 127
    %v335 = vunpack.c.l.s4 1966171168
    %v336 = vunpack.c.0.s8 %v335
    %v337 = vlaneseq
    %v338 = vshrl.u32 %v337, 7
    %v339 = vsub.s32 %v336, %v338
    %v340 = vrot.slane %v271, %v339
    %v341 = vcombine.high %v340, %v340
    %v343 = vunpack.c.l.s4 1966171168
    %v344 = vunpack.c.0.s8 %v343
    %v345 = vlaneseq
    %v346 = vshrl.u32 %v345, 7
    %v347 = vsub.s32 %v344, %v346
    %v348 = vrot.slane %v340, %v347
    %v350 = vunpack.c.l.s4 1966171168
    %v351 = vunpack.c.0.s8 %v350
    %v352 = vlaneseq
    %v353 = vshrl.u32 %v352, 7
    %v354 = vsub.s32 %v351, %v353
    %v355 = vrot.slane %v341, %v354
    %356 = vset.pattern.permute.xlu0 0
    %357 = vperm.xlu0 %356, %v348
    %v358 = vpop.permute.xlu0 %357
    %v359 = vlaneseq
    %v360 = vshrl.u32 %v359, 7
    %v361 = vsub.s32 0, %v360
    %v362 = vrot.slane %v358, %v361
    %363 = vset.pattern.permute.xlu0 0
    %364 = vperm.xlu0 %363, %v355
    %v365 = vpop.permute.xlu0 %364
    %v366 = vlaneseq
    %v367 = vshrl.u32 %v366, 7
    %v368 = vsub.s32 0, %v367
    %v369 = vrot.slane %v365, %v368
    %vm370 = vcmp.lt.s32.totalorder %v333, %v362
    %vm371 = vcmp.lt.s32.totalorder %v333, %v369
    %v372 = vpack.c.bf16 %v321, %v318
    %v373 = vpack.c.bf16 %v329, %v326
    %v374 = vpack.c.bf16 %v166, %v165
    %v375 = vpack.c.bf16 %v168, %v167
    %v376 = vpack.c.bf16 %v170, %v169
    %v377 = vpack.c.bf16 %v172, %v171
    %v378 = vpack.c.bf16 %v174, %v173
    %v379 = vpack.c.bf16 %v176, %v175
    %v380 = vpack.c.bf16 %v178, %v177
    %v381 = vpack.c.bf16 %v180, %v179
    %382 = vmatprep.subr.bf16.mxu0 0
    %383 = vmatpush1.bf16.msra.mxu0 %v374
    %384 = vmatprep.subr.bf16.mxu0 0
    %385 = vmatpush1.bf16.msra.mxu0 %v375
    %386 = vmatprep.subr.bf16.mxu0 0
    %387 = vmatpush1.bf16.msra.mxu0 %v376
    %388 = vmatprep.subr.bf16.mxu0 0
    %389 = vmatpush1.bf16.msra.mxu0 %v377
    %390 = vmatprep.subr.bf16.mxu0 0
    %391 = vmatpush1.bf16.msra.mxu0 %v378
    %392 = vmatprep.subr.bf16.mxu0 0
    %393 = vmatpush1.bf16.msra.mxu0 %v379
    %394 = vmatprep.subr.bf16.mxu0 0
    %395 = vmatpush1.bf16.msra.mxu0 %v380
    %396 = vmatprep.subr.bf16.mxu0 0
    %397 = vmatpush1.bf16.msra.mxu0 %v381
    %398 = vmatprep.subr.bf16.mxu0 0
    %399 = vmatpush1.bf16.msra.mxu0 0
    %400 = vmatprep.subr.bf16.mxu0 0
    %401 = vmatpush1.bf16.msra.mxu0 0
    %402 = vmatprep.subr.bf16.mxu0 0
    %403 = vmatpush1.bf16.msra.mxu0 0
    %404 = vmatprep.subr.bf16.mxu0 0
    %405 = vmatpush1.bf16.msra.mxu0 0
    %406 = vmatprep.subr.bf16.mxu0 0
    %407 = vmatpush1.bf16.msra.mxu0 0
    %408 = vmatprep.subr.bf16.mxu0 0
    %409 = vmatpush1.bf16.msra.mxu0 0
    %410 = vmatprep.subr.bf16.mxu0 0
    %411 = vmatpush1.bf16.msra.mxu0 0
    %412 = vmatprep.subr.bf16.mxu0 0
    %413 = vmatpush1.bf16.msra.mxu0 0
    %414 = vmatprep.mubr.bf16.mxu0 0
    %415 = vmatmul.mubr.bf16.gmra.mrb[0].mxu0 %v372
    %v416 = vpop.f32.mrb[0].mxu0
    %v417 = vadd.f32 0.0, %v416
    %v418 = vpop.f32.mrb[0].mxu0
    %v419 = vpop.f32.mrb[0].mxu0
    %v420 = vadd.f32 0.0, %v419
    %v421 = vpop.f32.mrb[0].mxu0
    %422 = vmatprep.mubr.bf16.mxu0 0
    %423 = vmatmul.mubr.bf16.gmra.mrb[0].mxu0 %v373
    %v424 = vpop.f32.mrb[0].mxu0
    %v425 = vadd.f32 0.0, %v424
    %v426 = vpop.f32.mrb[0].mxu0
    %v427 = vpop.f32.mrb[0].mxu0
    %v428 = vadd.f32 0.0, %v427
    %v429 = vpop.f32.mrb[0].mxu0
    %430 = vdwg.mxu0
    %v431 = vpack.c.bf16 %v182, %v181
    %v432 = vpack.c.bf16 %v184, %v183
    %v433 = vpack.c.bf16 %v186, %v185
    %v434 = vpack.c.bf16 %v188, %v187
    %v435 = vpack.c.bf16 %v190, %v189
    %v436 = vpack.c.bf16 %v192, %v191
    %v437 = vpack.c.bf16 %v194, %v193
    %v438 = vpack.c.bf16 %v196, %v195
    %439 = vmatprep.subr.bf16.mxu0 0
    %440 = vmatpush1.bf16.msra.mxu0 %v431
    %441 = vmatprep.subr.bf16.mxu0 0
    %442 = vmatpush1.bf16.msra.mxu0 %v432
    %443 = vmatprep.subr.bf16.mxu0 0
    %444 = vmatpush1.bf16.msra.mxu0 %v433
    %445 = vmatprep.subr.bf16.mxu0 0
    %446 = vmatpush1.bf16.msra.mxu0 %v434
    %447 = vmatprep.subr.bf16.mxu0 0
    %448 = vmatpush1.bf16.msra.mxu0 %v435
    %449 = vmatprep.subr.bf16.mxu0 0
    %450 = vmatpush1.bf16.msra.mxu0 %v436
    %451 = vmatprep.subr.bf16.mxu0 0
    %452 = vmatpush1.bf16.msra.mxu0 %v437
    %453 = vmatprep.subr.bf16.mxu0 0
    %454 = vmatpush1.bf16.msra.mxu0 %v438
    %455 = vmatprep.subr.bf16.mxu0 0
    %456 = vmatpush1.bf16.msra.mxu0 0
    %457 = vmatprep.subr.bf16.mxu0 0
    %458 = vmatpush1.bf16.msra.mxu0 0
    %459 = vmatprep.subr.bf16.mxu0 0
    %460 = vmatpush1.bf16.msra.mxu0 0
    %461 = vmatprep.subr.bf16.mxu0 0
    %462 = vmatpush1.bf16.msra.mxu0 0
    %463 = vmatprep.subr.bf16.mxu0 0
    %464 = vmatpush1.bf16.msra.mxu0 0
    %465 = vmatprep.subr.bf16.mxu0 0
    %466 = vmatpush1.bf16.msra.mxu0 0
    %467 = vmatprep.subr.bf16.mxu0 0
    %468 = vmatpush1.bf16.msra.mxu0 0
    %469 = vmatprep.subr.bf16.mxu0 0
    %470 = vmatpush1.bf16.msra.mxu0 0
    %471 = vmatprep.mubr.bf16.mxu0 0
    %472 = vmatmul.mubr.bf16.gmra.mrb[0].mxu0 %v372
    %v473 = vpop.f32.mrb[0].mxu0
    %v474 = vadd.f32 0.0, %v473
    %v475 = vpop.f32.mrb[0].mxu0
    %v476 = vpop.f32.mrb[0].mxu0
    %v477 = vadd.f32 0.0, %v476
    %v478 = vpop.f32.mrb[0].mxu0
    %479 = vmatprep.mubr.bf16.mxu0 0
    %480 = vmatmul.mubr.bf16.gmra.mrb[0].mxu0 %v373
    %v481 = vpop.f32.mrb[0].mxu0
    %v482 = vadd.f32 0.0, %v481
    %v483 = vpop.f32.mrb[0].mxu0
    %v484 = vpop.f32.mrb[0].mxu0
    %v485 = vadd.f32 0.0, %v484
    %v486 = vpop.f32.mrb[0].mxu0
    %487 = vdwg.mxu0
    %v488 = vpack.c.bf16 %v198, %v197
    %v489 = vpack.c.bf16 %v200, %v199
    %v490 = vpack.c.bf16 %v202, %v201
    %v491 = vpack.c.bf16 %v204, %v203
    %v492 = vpack.c.bf16 %v206, %v205
    %v493 = vpack.c.bf16 %v208, %v207
    %v494 = vpack.c.bf16 %v210, %v209
    %v495 = vpack.c.bf16 %v212, %v211
    %496 = vmatprep.subr.bf16.mxu0 0
    %497 = vmatpush1.bf16.msra.mxu0 %v488
    %498 = vmatprep.subr.bf16.mxu0 0
    %499 = vmatpush1.bf16.msra.mxu0 %v489
    %500 = vmatprep.subr.bf16.mxu0 0
    %501 = vmatpush1.bf16.msra.mxu0 %v490
    %502 = vmatprep.subr.bf16.mxu0 0
    %503 = vmatpush1.bf16.msra.mxu0 %v491
    %504 = vmatprep.subr.bf16.mxu0 0
    %505 = vmatpush1.bf16.msra.mxu0 %v492
    %506 = vmatprep.subr.bf16.mxu0 0
    %507 = vmatpush1.bf16.msra.mxu0 %v493
    %508 = vmatprep.subr.bf16.mxu0 0
    %509 = vmatpush1.bf16.msra.mxu0 %v494
    %510 = vmatprep.subr.bf16.mxu0 0
    %511 = vmatpush1.bf16.msra.mxu0 %v495
    %512 = vmatprep.subr.bf16.mxu0 0
    %513 = vmatpush1.bf16.msra.mxu0 0
    %514 = vmatprep.subr.bf16.mxu0 0
    %515 = vmatpush1.bf16.msra.mxu0 0
    %516 = vmatprep.subr.bf16.mxu0 0
    %517 = vmatpush1.bf16.msra.mxu0 0
    %518 = vmatprep.subr.bf16.mxu0 0
    %519 = vmatpush1.bf16.msra.mxu0 0
    %520 = vmatprep.subr.bf16.mxu0 0
    %521 = vmatpush1.bf16.msra.mxu0 0
    %522 = vmatprep.subr.bf16.mxu0 0
    %523 = vmatpush1.bf16.msra.mxu0 0
    %524 = vmatprep.subr.bf16.mxu0 0
    %525 = vmatpush1.bf16.msra.mxu0 0
    %526 = vmatprep.subr.bf16.mxu0 0
    %527 = vmatpush1.bf16.msra.mxu0 0
    %528 = vmatprep.mubr.bf16.mxu0 0
    %529 = vmatmul.mubr.bf16.gmra.mrb[0].mxu0 %v372
    %v530 = vpop.f32.mrb[0].mxu0
    %v531 = vadd.f32 0.0, %v530
    %v532 = vpop.f32.mrb[0].mxu0
    %v533 = vpop.f32.mrb[0].mxu0
    %v534 = vadd.f32 0.0, %v533
    %v535 = vpop.f32.mrb[0].mxu0
    %536 = vmatprep.mubr.bf16.mxu0 0
    %537 = vmatmul.mubr.bf16.gmra.mrb[0].mxu0 %v373
    %v538 = vpop.f32.mrb[0].mxu0
    %v539 = vadd.f32 0.0, %v538
    %v540 = vpop.f32.mrb[0].mxu0
    %v541 = vpop.f32.mrb[0].mxu0
    %v542 = vadd.f32 0.0, %v541
    %v543 = vpop.f32.mrb[0].mxu0
    %544 = vdwg.mxu0
    %v545 = vpack.c.bf16 %v477, %v474
    %v546 = vpack.c.bf16 %v485, %v482
    %v547 = vpack.c.bf16 %v534, %v531
    %v548 = vpack.c.bf16 %v542, %v539
    %vm549 = vcmp.ge.s32.totalorder %v333, 0
    %vm550 = vcmp.lt.s32.totalorder %v333, 32
    %vm551 = vmand %vm549, %vm550
    %v552 = vsel %vm551, 1, 0
    %v553 = vcvt.s32.f32 %v552
    %v554 = vmul.f32 %v417, %v553
    %v555 = vmul.f32 %v420, %v553
    %v556 = vmul.f32 %v425, %v553
    %v557 = vmul.f32 %v428, %v553
    %v558 = vpack.c.bf16 %v555, %v554
    %v559 = vpack.c.bf16 %v557, %v556
    %560 = vmatprep.subr.bf16.mxu0 0
    %561 = vmatpush1.bf16.xpose.msra.mxu0 %v545
    %562 = vmatprep.subr.bf16.mxu0 0
    %563 = vmatpush1.bf16.xpose.msra.mxu0 0
    %564 = vmatprep.subr.bf16.mxu0 0
    %565 = vmatpush1.bf16.xpose.msra.mxu0 0
    %566 = vmatprep.subr.bf16.mxu0 0
    %567 = vmatpush1.bf16.xpose.msra.mxu0 0
    %568 = vmatprep.subr.bf16.mxu0 0
    %569 = vmatpush1.bf16.xpose.msra.mxu0 0
    %570 = vmatprep.subr.bf16.mxu0 0
    %571 = vmatpush1.bf16.xpose.msra.mxu0 0
    %572 = vmatprep.subr.bf16.mxu0 0
    %573 = vmatpush1.bf16.xpose.msra.mxu0 0
    %574 = vmatprep.subr.bf16.mxu0 0
    %575 = vmatpush1.bf16.xpose.msra.mxu0 0
    %576 = vmatprep.subr.bf16.mxu0 0
    %577 = vmatpush1.bf16.xpose.msra.mxu0 0
    %578 = vmatprep.subr.bf16.mxu0 0
    %579 = vmatpush1.bf16.xpose.msra.mxu0 0
    %580 = vmatprep.subr.bf16.mxu0 0
    %581 = vmatpush1.bf16.xpose.msra.mxu0 0
    %582 = vmatprep.subr.bf16.mxu0 0
    %583 = vmatpush1.bf16.xpose.msra.mxu0 0
    %584 = vmatprep.subr.bf16.mxu0 0
    %585 = vmatpush1.bf16.xpose.msra.mxu0 0
    %586 = vmatprep.subr.bf16.mxu0 0
    %587 = vmatpush1.bf16.xpose.msra.mxu0 0
    %588 = vmatprep.subr.bf16.mxu0 0
    %589 = vmatpush1.bf16.xpose.msra.mxu0 0
    %590 = vmatprep.subr.bf16.mxu0 0
    %591 = vmatpush1.bf16.xpose.msra.mxu0 0
    %592 = vmatprep.mubr.bf16.mxu0 0
    %593 = vmatmul.mubr.bf16.gmra.mrb[0].mxu0 %v558
    %v594 = vpop.f32.mrb[0].mxu0
    %v595 = vadd.f32 0.0, %v594
    %v596 = vpop.f32.mrb[0].mxu0
    %v597 = vpop.f32.mrb[0].mxu0
    %v598 = vadd.f32 0.0, %v597
    %v599 = vpop.f32.mrb[0].mxu0
    %600 = vdwg.mxu0
    %601 = vmatprep.subr.bf16.mxu0 0
    %602 = vmatpush1.bf16.xpose.msra.mxu0 %v546
    %603 = vmatprep.subr.bf16.mxu0 0
    %604 = vmatpush1.bf16.xpose.msra.mxu0 0
    %605 = vmatprep.subr.bf16.mxu0 0
    %606 = vmatpush1.bf16.xpose.msra.mxu0 0
    %607 = vmatprep.subr.bf16.mxu0 0
    %608 = vmatpush1.bf16.xpose.msra.mxu0 0
    %609 = vmatprep.subr.bf16.mxu0 0
    %610 = vmatpush1.bf16.xpose.msra.mxu0 0
    %611 = vmatprep.subr.bf16.mxu0 0
    %612 = vmatpush1.bf16.xpose.msra.mxu0 0
    %613 = vmatprep.subr.bf16.mxu0 0
    %614 = vmatpush1.bf16.xpose.msra.mxu0 0
    %615 = vmatprep.subr.bf16.mxu0 0
    %616 = vmatpush1.bf16.xpose.msra.mxu0 0
    %617 = vmatprep.subr.bf16.mxu0 0
    %618 = vmatpush1.bf16.xpose.msra.mxu0 0
    %619 = vmatprep.subr.bf16.mxu0 0
    %620 = vmatpush1.bf16.xpose.msra.mxu0 0
    %621 = vmatprep.subr.bf16.mxu0 0
    %622 = vmatpush1.bf16.xpose.msra.mxu0 0
    %623 = vmatprep.subr.bf16.mxu0 0
    %624 = vmatpush1.bf16.xpose.msra.mxu0 0
    %625 = vmatprep.subr.bf16.mxu0 0
    %626 = vmatpush1.bf16.xpose.msra.mxu0 0
    %627 = vmatprep.subr.bf16.mxu0 0
    %628 = vmatpush1.bf16.xpose.msra.mxu0 0
    %629 = vmatprep.subr.bf16.mxu0 0
    %630 = vmatpush1.bf16.xpose.msra.mxu0 0
    %631 = vmatprep.subr.bf16.mxu0 0
    %632 = vmatpush1.bf16.xpose.msra.mxu0 0
    %633 = vmatprep.mubr.bf16.mxu0 0
    %634 = vmatmul.mubr.bf16.gmra.mrb[0].mxu0 %v559
    %v635 = vpop.f32.mrb[0].mxu0
    %v636 = vadd.f32 0.0, %v635
    %v637 = vpop.f32.mrb[0].mxu0
    %v638 = vpop.f32.mrb[0].mxu0
    %v639 = vadd.f32 0.0, %v638
    %v640 = vpop.f32.mrb[0].mxu0
    %641 = vdwg.mxu0
    %v642 = vmul.f32 %v595, 0.17677669
    %v643 = vmul.f32 %v598, 0.17677669
    %v644 = vmul.f32 %v636, 0.17677669
    %v645 = vmul.f32 %v639, 0.17677669
    %v646 = vsel %vm370, 1, 0
    %v647 = vsel %vm371, 1, 0
    %vm648 = vcmp.eq.s32.totalorder %v646, 1
    %vm649 = vcmp.eq.s32.totalorder %v647, 1
    %v650 = vsel %vm648, %v642, -1e+09
    %v651 = vsel %vm648, %v643, -1e+09
    %v652 = vsel %vm649, %v644, -1e+09
    %v653 = vsel %vm649, %v645, -1e+09
    %vm654 = vcmask 130048
    %v655 = vsel %vm654, %v650, -inf
    %656 = vmax.xlane.f32.xlu0 %v655
    %v657 = vpop.xlane.xlu0 %656
    %v658 = vsel %vm654, %v651, -inf
    %659 = vmax.xlane.f32.xlu0 %v658
    %v660 = vpop.xlane.xlu0 %659
    %v661 = vsel %vm654, %v652, -inf
    %662 = vmax.xlane.f32.xlu0 %v661
    %v663 = vpop.xlane.xlu0 %662
    %v664 = vsel %vm654, %v653, -inf
    %665 = vmax.xlane.f32.xlu0 %v664
    %v666 = vpop.xlane.xlu0 %665
    %v667 = vsub.f32 %v650, %v657
    %v668 = vsub.f32 %v651, %v660
    %v669 = vsub.f32 %v652, %v663
    %v670 = vsub.f32 %v653, %v666
    %v671 = vmul.f32 %v667, 1.442695
    %v672 = vpow.pop %v671
    %v673 = vmul.f32 %v668, 1.442695
    %v674 = vpow.pop %v673
    %v675 = vmul.f32 %v669, 1.442695
    %v676 = vpow.pop %v675
    %v677 = vmul.f32 %v670, 1.442695
    %v678 = vpow.pop %v677
    %v679 = vsel %vm654, %v672, 0.0
    %680 = vadd.xlane.f32.xlu0 %v679
    %v681 = vpop.xlane.xlu0 %680
    %v682 = vsel %vm654, %v674, 0.0
    %683 = vadd.xlane.f32.xlu0 %v682
    %v684 = vpop.xlane.xlu0 %683
    %v685 = vsel %vm654, %v676, 0.0
    %686 = vadd.xlane.f32.xlu0 %v685
    %v687 = vpop.xlane.xlu0 %686
    %v688 = vsel %vm654, %v678, 0.0
    %689 = vadd.xlane.f32.xlu0 %v688
    %v690 = vpop.xlane.xlu0 %689
    %v691 = vrcp.pop %v681
    %v692 = vrcp.pop %v684
    %v693 = vrcp.pop %v687
    %v694 = vrcp.pop %v690
    %v695 = vmul.f32 %v672, %v691
    %v696 = vmul.f32 %v674, %v692
    %v697 = vmul.f32 %v676, %v693
    %v698 = vmul.f32 %v678, %v694
    %v699 = vpack.c.bf16 %v696, %v695
    %v700 = vpack.c.bf16 %v698, %v697
    %v702 = vsel %vm654, %v699, 0
    %704 = vmatprep.subr.bf16.mxu0 0
    %705 = vmatpush1.bf16.msra.mxu0 %v547
    %706 = vmatprep.subr.bf16.mxu0 0
    %707 = vmatpush1.bf16.msra.mxu0 0
    %708 = vmatprep.subr.bf16.mxu0 0
    %709 = vmatpush1.bf16.msra.mxu0 0
    %710 = vmatprep.subr.bf16.mxu0 0
    %711 = vmatpush1.bf16.msra.mxu0 0
    %712 = vmatprep.subr.bf16.mxu0 0
    %713 = vmatpush1.bf16.msra.mxu0 0
    %714 = vmatprep.subr.bf16.mxu0 0
    %715 = vmatpush1.bf16.msra.mxu0 0
    %716 = vmatprep.subr.bf16.mxu0 0
    %717 = vmatpush1.bf16.msra.mxu0 0
    %718 = vmatprep.subr.bf16.mxu0 0
    %719 = vmatpush1.bf16.msra.mxu0 0
    %720 = vmatprep.subr.bf16.mxu0 0
    %721 = vmatpush1.bf16.msra.mxu0 0
    %722 = vmatprep.subr.bf16.mxu0 0
    %723 = vmatpush1.bf16.msra.mxu0 0
    %724 = vmatprep.subr.bf16.mxu0 0
    %725 = vmatpush1.bf16.msra.mxu0 0
    %726 = vmatprep.subr.bf16.mxu0 0
    %727 = vmatpush1.bf16.msra.mxu0 0
    %728 = vmatprep.subr.bf16.mxu0 0
    %729 = vmatpush1.bf16.msra.mxu0 0
    %730 = vmatprep.subr.bf16.mxu0 0
    %731 = vmatpush1.bf16.msra.mxu0 0
    %732 = vmatprep.subr.bf16.mxu0 0
    %733 = vmatpush1.bf16.msra.mxu0 0
    %734 = vmatprep.subr.bf16.mxu0 0
    %735 = vmatpush1.bf16.msra.mxu0 0
    %736 = vmatprep.mubr.bf16.mxu0 0
    %737 = vmatmul.mubr.bf16.gmra.mrb[0].mxu0 %v702
    %v738 = vpop.f32.mrb[0].mxu0
    %v739 = vadd.f32 0.0, %v738
    %v740 = vpop.f32.mrb[0].mxu0
    %v741 = vpop.f32.mrb[0].mxu0
    %v742 = vadd.f32 0.0, %v741
    %v743 = vpop.f32.mrb[0].mxu0
    %744 = vdwg.mxu0
    %v746 = vsel %vm654, %v700, 0
    %748 = vmatprep.subr.bf16.mxu0 0
    %749 = vmatpush1.bf16.msra.mxu0 %v548
    %750 = vmatprep.subr.bf16.mxu0 0
    %751 = vmatpush1.bf16.msra.mxu0 0
    %752 = vmatprep.subr.bf16.mxu0 0
    %753 = vmatpush1.bf16.msra.mxu0 0
    %754 = vmatprep.subr.bf16.mxu0 0
    %755 = vmatpush1.bf16.msra.mxu0 0
    %756 = vmatprep.subr.bf16.mxu0 0
    %757 = vmatpush1.bf16.msra.mxu0 0
    %758 = vmatprep.subr.bf16.mxu0 0
    %759 = vmatpush1.bf16.msra.mxu0 0
    %760 = vmatprep.subr.bf16.mxu0 0
    %761 = vmatpush1.bf16.msra.mxu0 0
    %762 = vmatprep.subr.bf16.mxu0 0
    %763 = vmatpush1.bf16.msra.mxu0 0
    %764 = vmatprep.subr.bf16.mxu0 0
    %765 = vmatpush1.bf16.msra.mxu0 0
    %766 = vmatprep.subr.bf16.mxu0 0
    %767 = vmatpush1.bf16.msra.mxu0 0
    %768 = vmatprep.subr.bf16.mxu0 0
    %769 = vmatpush1.bf16.msra.mxu0 0
    %770 = vmatprep.subr.bf16.mxu0 0
    %771 = vmatpush1.bf16.msra.mxu0 0
    %772 = vmatprep.subr.bf16.mxu0 0
    %773 = vmatpush1.bf16.msra.mxu0 0
    %774 = vmatprep.subr.bf16.mxu0 0
    %775 = vmatpush1.bf16.msra.mxu0 0
    %776 = vmatprep.subr.bf16.mxu0 0
    %777 = vmatpush1.bf16.msra.mxu0 0
    %778 = vmatprep.subr.bf16.mxu0 0
    %779 = vmatpush1.bf16.msra.mxu0 0
    %780 = vmatprep.mubr.bf16.mxu0 0
    %781 = vmatmul.mubr.bf16.gmra.mrb[0].mxu0 %v746
    %v782 = vpop.f32.mrb[0].mxu0
    %v783 = vadd.f32 0.0, %v782
    %v784 = vpop.f32.mrb[0].mxu0
    %v785 = vpop.f32.mrb[0].mxu0
    %v786 = vadd.f32 0.0, %v785
    %v787 = vpop.f32.mrb[0].mxu0
    %788 = vdwg.mxu0
    %v789 = vmul.f32 %v739, %v553
    %v790 = vmul.f32 %v742, %v553
    %v791 = vmul.f32 %v783, %v553
    %v792 = vmul.f32 %v786, %v553
    %v793 = vadd.f32 %v789, 0.0
    %v794 = vadd.f32 %v790, 0.0
    %v795 = vadd.f32 %v791, 0.0
    %v796 = vadd.f32 %v792, 0.0
    %vm797 = vcmp.ge.s32.totalorder %v333, 32
    %vm798 = vcmp.lt.s32.totalorder %v333, 64
    %vm799 = vmand %vm797, %vm798
    %v800 = vsel %vm799, 1, 0
    %v801 = vcvt.s32.f32 %v800
    %v802 = vmul.f32 %v417, %v801
    %v803 = vmul.f32 %v420, %v801
    %v804 = vmul.f32 %v425, %v801
    %v805 = vmul.f32 %v428, %v801
    %v806 = vpack.c.bf16 %v803, %v802
    %v807 = vpack.c.bf16 %v805, %v804
    %808 = vmatprep.subr.bf16.mxu0 0
    %809 = vmatpush1.bf16.xpose.msra.mxu0 %v545
    %810 = vmatprep.subr.bf16.mxu0 0
    %811 = vmatpush1.bf16.xpose.msra.mxu0 0
    %812 = vmatprep.subr.bf16.mxu0 0
    %813 = vmatpush1.bf16.xpose.msra.mxu0 0
    %814 = vmatprep.subr.bf16.mxu0 0
    %815 = vmatpush1.bf16.xpose.msra.mxu0 0
    %816 = vmatprep.subr.bf16.mxu0 0
    %817 = vmatpush1.bf16.xpose.msra.mxu0 0
    %818 = vmatprep.subr.bf16.mxu0 0
    %819 = vmatpush1.bf16.xpose.msra.mxu0 0
    %820 = vmatprep.subr.bf16.mxu0 0
    %821 = vmatpush1.bf16.xpose.msra.mxu0 0
    %822 = vmatprep.subr.bf16.mxu0 0
    %823 = vmatpush1.bf16.xpose.msra.mxu0 0
    %824 = vmatprep.subr.bf16.mxu0 0
    %825 = vmatpush1.bf16.xpose.msra.mxu0 0
    %826 = vmatprep.subr.bf16.mxu0 0
    %827 = vmatpush1.bf16.xpose.msra.mxu0 0
    %828 = vmatprep.subr.bf16.mxu0 0
    %829 = vmatpush1.bf16.xpose.msra.mxu0 0
    %830 = vmatprep.subr.bf16.mxu0 0
    %831 = vmatpush1.bf16.xpose.msra.mxu0 0
    %832 = vmatprep.subr.bf16.mxu0 0
    %833 = vmatpush1.bf16.xpose.msra.mxu0 0
    %834 = vmatprep.subr.bf16.mxu0 0
    %835 = vmatpush1.bf16.xpose.msra.mxu0 0
    %836 = vmatprep.subr.bf16.mxu0 0
    %837 = vmatpush1.bf16.xpose.msra.mxu0 0
    %838 = vmatprep.subr.bf16.mxu0 0
    %839 = vmatpush1.bf16.xpose.msra.mxu0 0
    %840 = vmatprep.mubr.bf16.mxu0 0
    %841 = vmatmul.mubr.bf16.gmra.mrb[0].mxu0 %v806
    %v842 = vpop.f32.mrb[0].mxu0
    %v843 = vadd.f32 0.0, %v842
    %v844 = vpop.f32.mrb[0].mxu0
    %v845 = vpop.f32.mrb[0].mxu0
    %v846 = vadd.f32 0.0, %v845
    %v847 = vpop.f32.mrb[0].mxu0
    %848 = vdwg.mxu0
    %849 = vmatprep.subr.bf16.mxu0 0
    %850 = vmatpush1.bf16.xpose.msra.mxu0 %v546
    %851 = vmatprep.subr.bf16.mxu0 0
    %852 = vmatpush1.bf16.xpose.msra.mxu0 0
    %853 = vmatprep.subr.bf16.mxu0 0
    %854 = vmatpush1.bf16.xpose.msra.mxu0 0
    %855 = vmatprep.subr.bf16.mxu0 0
    %856 = vmatpush1.bf16.xpose.msra.mxu0 0
    %857 = vmatprep.subr.bf16.mxu0 0
    %858 = vmatpush1.bf16.xpose.msra.mxu0 0
    %859 = vmatprep.subr.bf16.mxu0 0
    %860 = vmatpush1.bf16.xpose.msra.mxu0 0
    %861 = vmatprep.subr.bf16.mxu0 0
    %862 = vmatpush1.bf16.xpose.msra.mxu0 0
    %863 = vmatprep.subr.bf16.mxu0 0
    %864 = vmatpush1.bf16.xpose.msra.mxu0 0
    %865 = vmatprep.subr.bf16.mxu0 0
    %866 = vmatpush1.bf16.xpose.msra.mxu0 0
    %867 = vmatprep.subr.bf16.mxu0 0
    %868 = vmatpush1.bf16.xpose.msra.mxu0 0
    %869 = vmatprep.subr.bf16.mxu0 0
    %870 = vmatpush1.bf16.xpose.msra.mxu0 0
    %871 = vmatprep.subr.bf16.mxu0 0
    %872 = vmatpush1.bf16.xpose.msra.mxu0 0
    %873 = vmatprep.subr.bf16.mxu0 0
    %874 = vmatpush1.bf16.xpose.msra.mxu0 0
    %875 = vmatprep.subr.bf16.mxu0 0
    %876 = vmatpush1.bf16.xpose.msra.mxu0 0
    %877 = vmatprep.subr.bf16.mxu0 0
    %878 = vmatpush1.bf16.xpose.msra.mxu0 0
    %879 = vmatprep.subr.bf16.mxu0 0
    %880 = vmatpush1.bf16.xpose.msra.mxu0 0
    %881 = vmatprep.mubr.bf16.mxu0 0
    %882 = vmatmul.mubr.bf16.gmra.mrb[0].mxu0 %v807
    %v883 = vpop.f32.mrb[0].mxu0
    %v884 = vadd.f32 0.0, %v883
    %v885 = vpop.f32.mrb[0].mxu0
    %v886 = vpop.f32.mrb[0].mxu0
    %v887 = vadd.f32 0.0, %v886
    %v888 = vpop.f32.mrb[0].mxu0
    %889 = vdwg.mxu0
    %v890 = vmul.f32 %v843, 0.17677669
    %v891 = vmul.f32 %v846, 0.17677669
    %v892 = vmul.f32 %v884, 0.17677669
    %v893 = vmul.f32 %v887, 0.17677669
    %v894 = vsel %vm648, %v890, -1e+09
    %v895 = vsel %vm648, %v891, -1e+09
    %v896 = vsel %vm649, %v892, -1e+09
    %v897 = vsel %vm649, %v893, -1e+09
    %v898 = vsel %vm654, %v894, -inf
    %899 = vmax.xlane.f32.xlu0 %v898
    %v900 = vpop.xlane.xlu0 %899
    %v901 = vsel %vm654, %v895, -inf
    %902 = vmax.xlane.f32.xlu0 %v901
    %v903 = vpop.xlane.xlu0 %902
    %v904 = vsel %vm654, %v896, -inf
    %905 = vmax.xlane.f32.xlu0 %v904
    %v906 = vpop.xlane.xlu0 %905
    %v907 = vsel %vm654, %v897, -inf
    %908 = vmax.xlane.f32.xlu0 %v907
    %v909 = vpop.xlane.xlu0 %908
    %v910 = vsub.f32 %v894, %v900
    %v911 = vsub.f32 %v895, %v903
    %v912 = vsub.f32 %v896, %v906
    %v913 = vsub.f32 %v897, %v909
    %v914 = vmul.f32 %v910, 1.442695
    %v915 = vpow.pop %v914
    %v916 = vmul.f32 %v911, 1.442695
    %v917 = vpow.pop %v916
    %v918 = vmul.f32 %v912, 1.442695
    %v919 = vpow.pop %v918
    %v920 = vmul.f32 %v913, 1.442695
    %v921 = vpow.pop %v920
    %v922 = vsel %vm654, %v915, 0.0
    %923 = vadd.xlane.f32.xlu0 %v922
    %v924 = vpop.xlane.xlu0 %923
    %v925 = vsel %vm654, %v917, 0.0
    %926 = vadd.xlane.f32.xlu0 %v925
    %v927 = vpop.xlane.xlu0 %926
    %v928 = vsel %vm654, %v919, 0.0
    %929 = vadd.xlane.f32.xlu0 %v928
    %v930 = vpop.xlane.xlu0 %929
    %v931 = vsel %vm654, %v921, 0.0
    %932 = vadd.xlane.f32.xlu0 %v931
    %v933 = vpop.xlane.xlu0 %932
    %v934 = vrcp.pop %v924
    %v935 = vrcp.pop %v927
    %v936 = vrcp.pop %v930
    %v937 = vrcp.pop %v933
    %v938 = vmul.f32 %v915, %v934
    %v939 = vmul.f32 %v917, %v935
    %v940 = vmul.f32 %v919, %v936
    %v941 = vmul.f32 %v921, %v937
    %v942 = vpack.c.bf16 %v939, %v938
    %v943 = vpack.c.bf16 %v941, %v940
    %v945 = vsel %vm654, %v942, 0
    %947 = vmatprep.subr.bf16.mxu0 0
    %948 = vmatpush1.bf16.msra.mxu0 %v547
    %949 = vmatprep.subr.bf16.mxu0 0
    %950 = vmatpush1.bf16.msra.mxu0 0
    %951 = vmatprep.subr.bf16.mxu0 0
    %952 = vmatpush1.bf16.msra.mxu0 0
    %953 = vmatprep.subr.bf16.mxu0 0
    %954 = vmatpush1.bf16.msra.mxu0 0
    %955 = vmatprep.subr.bf16.mxu0 0
    %956 = vmatpush1.bf16.msra.mxu0 0
    %957 = vmatprep.subr.bf16.mxu0 0
    %958 = vmatpush1.bf16.msra.mxu0 0
    %959 = vmatprep.subr.bf16.mxu0 0
    %960 = vmatpush1.bf16.msra.mxu0 0
    %961 = vmatprep.subr.bf16.mxu0 0
    %962 = vmatpush1.bf16.msra.mxu0 0
    %963 = vmatprep.subr.bf16.mxu0 0
    %964 = vmatpush1.bf16.msra.mxu0 0
    %965 = vmatprep.subr.bf16.mxu0 0
    %966 = vmatpush1.bf16.msra.mxu0 0
    %967 = vmatprep.subr.bf16.mxu0 0
    %968 = vmatpush1.bf16.msra.mxu0 0
    %969 = vmatprep.subr.bf16.mxu0 0
    %970 = vmatpush1.bf16.msra.mxu0 0
    %971 = vmatprep.subr.bf16.mxu0 0
    %972 = vmatpush1.bf16.msra.mxu0 0
    %973 = vmatprep.subr.bf16.mxu0 0
    %974 = vmatpush1.bf16.msra.mxu0 0
    %975 = vmatprep.subr.bf16.mxu0 0
    %976 = vmatpush1.bf16.msra.mxu0 0
    %977 = vmatprep.subr.bf16.mxu0 0
    %978 = vmatpush1.bf16.msra.mxu0 0
    %979 = vmatprep.mubr.bf16.mxu0 0
    %980 = vmatmul.mubr.bf16.gmra.mrb[0].mxu0 %v945
    %v981 = vpop.f32.mrb[0].mxu0
    %v982 = vadd.f32 0.0, %v981
    %v983 = vpop.f32.mrb[0].mxu0
    %v984 = vpop.f32.mrb[0].mxu0
    %v985 = vadd.f32 0.0, %v984
    %v986 = vpop.f32.mrb[0].mxu0
    %987 = vdwg.mxu0
    %v989 = vsel %vm654, %v943, 0
    %991 = vmatprep.subr.bf16.mxu0 0
    %992 = vmatpush1.bf16.msra.mxu0 %v548
    %993 = vmatprep.subr.bf16.mxu0 0
    %994 = vmatpush1.bf16.msra.mxu0 0
    %995 = vmatprep.subr.bf16.mxu0 0
    %996 = vmatpush1.bf16.msra.mxu0 0
    %997 = vmatprep.subr.bf16.mxu0 0
    %998 = vmatpush1.bf16.msra.mxu0 0
    %999 = vmatprep.subr.bf16.mxu0 0
    %1000 = vmatpush1.bf16.msra.mxu0 0
    %1001 = vmatprep.subr.bf16.mxu0 0
    %1002 = vmatpush1.bf16.msra.mxu0 0
    %1003 = vmatprep.subr.bf16.mxu0 0
    %1004 = vmatpush1.bf16.msra.mxu0 0
    %1005 = vmatprep.subr.bf16.mxu0 0
    %1006 = vmatpush1.bf16.msra.mxu0 0
    %1007 = vmatprep.subr.bf16.mxu0 0
    %1008 = vmatpush1.bf16.msra.mxu0 0
    %1009 = vmatprep.subr.bf16.mxu0 0
    %1010 = vmatpush1.bf16.msra.mxu0 0
    %1011 = vmatprep.subr.bf16.mxu0 0
    %1012 = vmatpush1.bf16.msra.mxu0 0
    %1013 = vmatprep.subr.bf16.mxu0 0
    %1014 = vmatpush1.bf16.msra.mxu0 0
    %1015 = vmatprep.subr.bf16.mxu0 0
    %1016 = vmatpush1.bf16.msra.mxu0 0
    %1017 = vmatprep.subr.bf16.mxu0 0
    %1018 = vmatpush1.bf16.msra.mxu0 0
    %1019 = vmatprep.subr.bf16.mxu0 0
    %1020 = vmatpush1.bf16.msra.mxu0 0
    %1021 = vmatprep.subr.bf16.mxu0 0
    %1022 = vmatpush1.bf16.msra.mxu0 0
    %1023 = vmatprep.mubr.bf16.mxu0 0
    %1024 = vmatmul.mubr.bf16.gmra.mrb[0].mxu0 %v989
    %v1025 = vpop.f32.mrb[0].mxu0
    %v1026 = vadd.f32 0.0, %v1025
    %v1027 = vpop.f32.mrb[0].mxu0
    %v1028 = vpop.f32.mrb[0].mxu0
    %v1029 = vadd.f32 0.0, %v1028
    %v1030 = vpop.f32.mrb[0].mxu0
    %1031 = vdwg.mxu0
    %v1032 = vmul.f32 %v982, %v801
    %v1033 = vmul.f32 %v985, %v801
    %v1034 = vmul.f32 %v1026, %v801
    %v1035 = vmul.f32 %v1029, %v801
    %v1036 = vadd.f32 %v793, %v1032
    %v1037 = vadd.f32 %v794, %v1033
    %v1038 = vadd.f32 %v795, %v1034
    %v1039 = vadd.f32 %v796, %v1035
    %vm1040 = vcmp.ge.s32.totalorder %v333, 64
    %vm1041 = vcmp.lt.s32.totalorder %v333, 96
    %vm1042 = vmand %vm1040, %vm1041
    %v1043 = vsel %vm1042, 1, 0
    %v1044 = vcvt.s32.f32 %v1043
    %v1045 = vmul.f32 %v417, %v1044
    %v1046 = vmul.f32 %v420, %v1044
    %v1047 = vmul.f32 %v425, %v1044
    %v1048 = vmul.f32 %v428, %v1044
    %v1049 = vpack.c.bf16 %v1046, %v1045
    %v1050 = vpack.c.bf16 %v1048, %v1047
    %1051 = vmatprep.subr.bf16.mxu0 0
    %1052 = vmatpush1.bf16.xpose.msra.mxu0 %v545
    %1053 = vmatprep.subr.bf16.mxu0 0
    %1054 = vmatpush1.bf16.xpose.msra.mxu0 0
    %1055 = vmatprep.subr.bf16.mxu0 0
    %1056 = vmatpush1.bf16.xpose.msra.mxu0 0
    %1057 = vmatprep.subr.bf16.mxu0 0
    %1058 = vmatpush1.bf16.xpose.msra.mxu0 0
    %1059 = vmatprep.subr.bf16.mxu0 0
    %1060 = vmatpush1.bf16.xpose.msra.mxu0 0
    %1061 = vmatprep.subr.bf16.mxu0 0
    %1062 = vmatpush1.bf16.xpose.msra.mxu0 0
    %1063 = vmatprep.subr.bf16.mxu0 0
    %1064 = vmatpush1.bf16.xpose.msra.mxu0 0
    %1065 = vmatprep.subr.bf16.mxu0 0
    %1066 = vmatpush1.bf16.xpose.msra.mxu0 0
    %1067 = vmatprep.subr.bf16.mxu0 0
    %1068 = vmatpush1.bf16.xpose.msra.mxu0 0
    %1069 = vmatprep.subr.bf16.mxu0 0
    %1070 = vmatpush1.bf16.xpose.msra.mxu0 0
    %1071 = vmatprep.subr.bf16.mxu0 0
    %1072 = vmatpush1.bf16.xpose.msra.mxu0 0
    %1073 = vmatprep.subr.bf16.mxu0 0
    %1074 = vmatpush1.bf16.xpose.msra.mxu0 0
    %1075 = vmatprep.subr.bf16.mxu0 0
    %1076 = vmatpush1.bf16.xpose.msra.mxu0 0
    %1077 = vmatprep.subr.bf16.mxu0 0
    %1078 = vmatpush1.bf16.xpose.msra.mxu0 0
    %1079 = vmatprep.subr.bf16.mxu0 0
    %1080 = vmatpush1.bf16.xpose.msra.mxu0 0
    %1081 = vmatprep.subr.bf16.mxu0 0
    %1082 = vmatpush1.bf16.xpose.msra.mxu0 0
    %1083 = vmatprep.mubr.bf16.mxu0 0
    %1084 = vmatmul.mubr.bf16.gmra.mrb[0].mxu0 %v1049
    %v1085 = vpop.f32.mrb[0].mxu0
    %v1086 = vadd.f32 0.0, %v1085
    %v1087 = vpop.f32.mrb[0].mxu0
    %v1088 = vpop.f32.mrb[0].mxu0
    %v1089 = vadd.f32 0.0, %v1088
    %v1090 = vpop.f32.mrb[0].mxu0
    %1091 = vdwg.mxu0
    %1092 = vmatprep.subr.bf16.mxu0 0
    %1093 = vmatpush1.bf16.xpose.msra.mxu0 %v546
    %1094 = vmatprep.subr.bf16.mxu0 0
    %1095 = vmatpush1.bf16.xpose.msra.mxu0 0
    %1096 = vmatprep.subr.bf16.mxu0 0
    %1097 = vmatpush1.bf16.xpose.msra.mxu0 0
    %1098 = vmatprep.subr.bf16.mxu0 0
    %1099 = vmatpush1.bf16.xpose.msra.mxu0 0
    %1100 = vmatprep.subr.bf16.mxu0 0
    %1101 = vmatpush1.bf16.xpose.msra.mxu0 0
    %1102 = vmatprep.subr.bf16.mxu0 0
    %1103 = vmatpush1.bf16.xpose.msra.mxu0 0
    %1104 = vmatprep.subr.bf16.mxu0 0
    %1105 = vmatpush1.bf16.xpose.msra.mxu0 0
    %1106 = vmatprep.subr.bf16.mxu0 0
    %1107 = vmatpush1.bf16.xpose.msra.mxu0 0
    %1108 = vmatprep.subr.bf16.mxu0 0
    %1109 = vmatpush1.bf16.xpose.msra.mxu0 0
    %1110 = vmatprep.subr.bf16.mxu0 0
    %1111 = vmatpush1.bf16.xpose.msra.mxu0 0
    %1112 = vmatprep.subr.bf16.mxu0 0
    %1113 = vmatpush1.bf16.xpose.msra.mxu0 0
    %1114 = vmatprep.subr.bf16.mxu0 0
    %1115 = vmatpush1.bf16.xpose.msra.mxu0 0
    %1116 = vmatprep.subr.bf16.mxu0 0
    %1117 = vmatpush1.bf16.xpose.msra.mxu0 0
    %1118 = vmatprep.subr.bf16.mxu0 0
    %1119 = vmatpush1.bf16.xpose.msra.mxu0 0
    %1120 = vmatprep.subr.bf16.mxu0 0
    %1121 = vmatpush1.bf16.xpose.msra.mxu0 0
    %1122 = vmatprep.subr.bf16.mxu0 0
    %1123 = vmatpush1.bf16.xpose.msra.mxu0 0
    %1124 = vmatprep.mubr.bf16.mxu0 0
    %1125 = vmatmul.mubr.bf16.gmra.mrb[0].mxu0 %v1050
    %v1126 = vpop.f32.mrb[0].mxu0
    %v1127 = vadd.f32 0.0, %v1126
    %v1128 = vpop.f32.mrb[0].mxu0
    %v1129 = vpop.f32.mrb[0].mxu0
    %v1130 = vadd.f32 0.0, %v1129
    %v1131 = vpop.f32.mrb[0].mxu0
    %1132 = vdwg.mxu0
    %v1133 = vmul.f32 %v1086, 0.17677669
    %v1134 = vmul.f32 %v1089, 0.17677669
    %v1135 = vmul.f32 %v1127, 0.17677669
    %v1136 = vmul.f32 %v1130, 0.17677669
    %v1137 = vsel %vm648, %v1133, -1e+09
    %v1138 = vsel %vm648, %v1134, -1e+09
    %v1139 = vsel %vm649, %v1135, -1e+09
    %v1140 = vsel %vm649, %v1136, -1e+09
    %v1141 = vsel %vm654, %v1137, -inf
    %1142 = vmax.xlane.f32.xlu0 %v1141
    %v1143 = vpop.xlane.xlu0 %1142
    %v1144 = vsel %vm654, %v1138, -inf
    %1145 = vmax.xlane.f32.xlu0 %v1144
    %v1146 = vpop.xlane.xlu0 %1145
    %v1147 = vsel %vm654, %v1139, -inf
    %1148 = vmax.xlane.f32.xlu0 %v1147
    %v1149 = vpop.xlane.xlu0 %1148
    %v1150 = vsel %vm654, %v1140, -inf
    %1151 = vmax.xlane.f32.xlu0 %v1150
    %v1152 = vpop.xlane.xlu0 %1151
    %v1153 = vsub.f32 %v1137, %v1143
    %v1154 = vsub.f32 %v1138, %v1146
    %v1155 = vsub.f32 %v1139, %v1149
    %v1156 = vsub.f32 %v1140, %v1152
    %v1157 = vmul.f32 %v1153, 1.442695
    %v1158 = vpow.pop %v1157
    %v1159 = vmul.f32 %v1154, 1.442695
    %v1160 = vpow.pop %v1159
    %v1161 = vmul.f32 %v1155, 1.442695
    %v1162 = vpow.pop %v1161
    %v1163 = vmul.f32 %v1156, 1.442695
    %v1164 = vpow.pop %v1163
    %v1165 = vsel %vm654, %v1158, 0.0
    %1166 = vadd.xlane.f32.xlu0 %v1165
    %v1167 = vpop.xlane.xlu0 %1166
    %v1168 = vsel %vm654, %v1160, 0.0
    %1169 = vadd.xlane.f32.xlu0 %v1168
    %v1170 = vpop.xlane.xlu0 %1169
    %v1171 = vsel %vm654, %v1162, 0.0
    %1172 = vadd.xlane.f32.xlu0 %v1171
    %v1173 = vpop.xlane.xlu0 %1172
    %v1174 = vsel %vm654, %v1164, 0.0
    %1175 = vadd.xlane.f32.xlu0 %v1174
    %v1176 = vpop.xlane.xlu0 %1175
    %v1177 = vrcp.pop %v1167
    %v1178 = vrcp.pop %v1170
    %v1179 = vrcp.pop %v1173
    %v1180 = vrcp.pop %v1176
    %v1181 = vmul.f32 %v1158, %v1177
    %v1182 = vmul.f32 %v1160, %v1178
    %v1183 = vmul.f32 %v1162, %v1179
    %v1184 = vmul.f32 %v1164, %v1180
    %v1185 = vpack.c.bf16 %v1182, %v1181
    %v1186 = vpack.c.bf16 %v1184, %v1183
    %v1188 = vsel %vm654, %v1185, 0
    %1190 = vmatprep.subr.bf16.mxu0 0
    %1191 = vmatpush1.bf16.msra.mxu0 %v547
    %1192 = vmatprep.subr.bf16.mxu0 0
    %1193 = vmatpush1.bf16.msra.mxu0 0
    %1194 = vmatprep.subr.bf16.mxu0 0
    %1195 = vmatpush1.bf16.msra.mxu0 0
    %1196 = vmatprep.subr.bf16.mxu0 0
    %1197 = vmatpush1.bf16.msra.mxu0 0
    %1198 = vmatprep.subr.bf16.mxu0 0
    %1199 = vmatpush1.bf16.msra.mxu0 0
    %1200 = vmatprep.subr.bf16.mxu0 0
    %1201 = vmatpush1.bf16.msra.mxu0 0
    %1202 = vmatprep.subr.bf16.mxu0 0
    %1203 = vmatpush1.bf16.msra.mxu0 0
    %1204 = vmatprep.subr.bf16.mxu0 0
    %1205 = vmatpush1.bf16.msra.mxu0 0
    %1206 = vmatprep.subr.bf16.mxu0 0
    %1207 = vmatpush1.bf16.msra.mxu0 0
    %1208 = vmatprep.subr.bf16.mxu0 0
    %1209 = vmatpush1.bf16.msra.mxu0 0
    %1210 = vmatprep.subr.bf16.mxu0 0
    %1211 = vmatpush1.bf16.msra.mxu0 0
    %1212 = vmatprep.subr.bf16.mxu0 0
    %1213 = vmatpush1.bf16.msra.mxu0 0
    %1214 = vmatprep.subr.bf16.mxu0 0
    %1215 = vmatpush1.bf16.msra.mxu0 0
    %1216 = vmatprep.subr.bf16.mxu0 0
    %1217 = vmatpush1.bf16.msra.mxu0 0
    %1218 = vmatprep.subr.bf16.mxu0 0
    %1219 = vmatpush1.bf16.msra.mxu0 0
    %1220 = vmatprep.subr.bf16.mxu0 0
    %1221 = vmatpush1.bf16.msra.mxu0 0
    %1222 = vmatprep.mubr.bf16.mxu0 0
    %1223 = vmatmul.mubr.bf16.gmra.mrb[0].mxu0 %v1188
    %v1224 = vpop.f32.mrb[0].mxu0
    %v1225 = vadd.f32 0.0, %v1224
    %v1226 = vpop.f32.mrb[0].mxu0
    %v1227 = vpop.f32.mrb[0].mxu0
    %v1228 = vadd.f32 0.0, %v1227
    %v1229 = vpop.f32.mrb[0].mxu0
    %1230 = vdwg.mxu0
    %v1232 = vsel %vm654, %v1186, 0
    %1234 = vmatprep.subr.bf16.mxu0 0
    %1235 = vmatpush1.bf16.msra.mxu0 %v548
    %1236 = vmatprep.subr.bf16.mxu0 0
    %1237 = vmatpush1.bf16.msra.mxu0 0
    %1238 = vmatprep.subr.bf16.mxu0 0
    %1239 = vmatpush1.bf16.msra.mxu0 0
    %1240 = vmatprep.subr.bf16.mxu0 0
    %1241 = vmatpush1.bf16.msra.mxu0 0
    %1242 = vmatprep.subr.bf16.mxu0 0
    %1243 = vmatpush1.bf16.msra.mxu0 0
    %1244 = vmatprep.subr.bf16.mxu0 0
    %1245 = vmatpush1.bf16.msra.mxu0 0
    %1246 = vmatprep.subr.bf16.mxu0 0
    %1247 = vmatpush1.bf16.msra.mxu0 0
    %1248 = vmatprep.subr.bf16.mxu0 0
    %1249 = vmatpush1.bf16.msra.mxu0 0
    %1250 = vmatprep.subr.bf16.mxu0 0
    %1251 = vmatpush1.bf16.msra.mxu0 0
    %1252 = vmatprep.subr.bf16.mxu0 0
    %1253 = vmatpush1.bf16.msra.mxu0 0
    %1254 = vmatprep.subr.bf16.mxu0 0
    %1255 = vmatpush1.bf16.msra.mxu0 0
    %1256 = vmatprep.subr.bf16.mxu0 0
    %1257 = vmatpush1.bf16.msra.mxu0 0
    %1258 = vmatprep.subr.bf16.mxu0 0
    %1259 = vmatpush1.bf16.msra.mxu0 0
    %1260 = vmatprep.subr.bf16.mxu0 0
    %1261 = vmatpush1.bf16.msra.mxu0 0
    %1262 = vmatprep.subr.bf16.mxu0 0
    %1263 = vmatpush1.bf16.msra.mxu0 0
    %1264 = vmatprep.subr.bf16.mxu0 0
    %1265 = vmatpush1.bf16.msra.mxu0 0
    %1266 = vmatprep.mubr.bf16.mxu0 0
    %1267 = vmatmul.mubr.bf16.gmra.mrb[0].mxu0 %v1232
    %v1268 = vpop.f32.mrb[0].mxu0
    %v1269 = vadd.f32 0.0, %v1268
    %v1270 = vpop.f32.mrb[0].mxu0
    %v1271 = vpop.f32.mrb[0].mxu0
    %v1272 = vadd.f32 0.0, %v1271
    %v1273 = vpop.f32.mrb[0].mxu0
    %1274 = vdwg.mxu0
    %v1275 = vmul.f32 %v1225, %v1044
    %v1276 = vmul.f32 %v1228, %v1044
    %v1277 = vmul.f32 %v1269, %v1044
    %v1278 = vmul.f32 %v1272, %v1044
    %v1279 = vadd.f32 %v1036, %v1275
    %v1280 = vadd.f32 %v1037, %v1276
    %v1281 = vadd.f32 %v1038, %v1277
    %v1282 = vadd.f32 %v1039, %v1278
    %vm1283 = vcmp.ge.s32.totalorder %v333, 96
    %vm1284 = vcmp.lt.s32.totalorder %v333, 128
    %vm1285 = vmand %vm1283, %vm1284
    %v1286 = vsel %vm1285, 1, 0
    %v1287 = vcvt.s32.f32 %v1286
    %v1288 = vmul.f32 %v417, %v1287
    %v1289 = vmul.f32 %v420, %v1287
    %v1290 = vmul.f32 %v425, %v1287
    %v1291 = vmul.f32 %v428, %v1287
    %v1292 = vpack.c.bf16 %v1289, %v1288
    %v1293 = vpack.c.bf16 %v1291, %v1290
    %1294 = vmatprep.subr.bf16.mxu0 0
    %1295 = vmatpush1.bf16.xpose.msra.mxu0 %v545
    %1296 = vmatprep.subr.bf16.mxu0 0
    %1297 = vmatpush1.bf16.xpose.msra.mxu0 0
    %1298 = vmatprep.subr.bf16.mxu0 0
    %1299 = vmatpush1.bf16.xpose.msra.mxu0 0
    %1300 = vmatprep.subr.bf16.mxu0 0
    %1301 = vmatpush1.bf16.xpose.msra.mxu0 0
    %1302 = vmatprep.subr.bf16.mxu0 0
    %1303 = vmatpush1.bf16.xpose.msra.mxu0 0
    %1304 = vmatprep.subr.bf16.mxu0 0
    %1305 = vmatpush1.bf16.xpose.msra.mxu0 0
    %1306 = vmatprep.subr.bf16.mxu0 0
    %1307 = vmatpush1.bf16.xpose.msra.mxu0 0
    %1308 = vmatprep.subr.bf16.mxu0 0
    %1309 = vmatpush1.bf16.xpose.msra.mxu0 0
    %1310 = vmatprep.subr.bf16.mxu0 0
    %1311 = vmatpush1.bf16.xpose.msra.mxu0 0
    %1312 = vmatprep.subr.bf16.mxu0 0
    %1313 = vmatpush1.bf16.xpose.msra.mxu0 0
    %1314 = vmatprep.subr.bf16.mxu0 0
    %1315 = vmatpush1.bf16.xpose.msra.mxu0 0
    %1316 = vmatprep.subr.bf16.mxu0 0
    %1317 = vmatpush1.bf16.xpose.msra.mxu0 0
    %1318 = vmatprep.subr.bf16.mxu0 0
    %1319 = vmatpush1.bf16.xpose.msra.mxu0 0
    %1320 = vmatprep.subr.bf16.mxu0 0
    %1321 = vmatpush1.bf16.xpose.msra.mxu0 0
    %1322 = vmatprep.subr.bf16.mxu0 0
    %1323 = vmatpush1.bf16.xpose.msra.mxu0 0
    %1324 = vmatprep.subr.bf16.mxu0 0
    %1325 = vmatpush1.bf16.xpose.msra.mxu0 0
    %1326 = vmatprep.mubr.bf16.mxu0 0
    %1327 = vmatmul.mubr.bf16.gmra.mrb[0].mxu0 %v1292
    %v1328 = vpop.f32.mrb[0].mxu0
    %v1329 = vadd.f32 0.0, %v1328
    %v1330 = vpop.f32.mrb[0].mxu0
    %v1331 = vpop.f32.mrb[0].mxu0
    %v1332 = vadd.f32 0.0, %v1331
    %v1333 = vpop.f32.mrb[0].mxu0
    %1334 = vdwg.mxu0
    %1335 = vmatprep.subr.bf16.mxu0 0
    %1336 = vmatpush1.bf16.xpose.msra.mxu0 %v546
    %1337 = vmatprep.subr.bf16.mxu0 0
    %1338 = vmatpush1.bf16.xpose.msra.mxu0 0
    %1339 = vmatprep.subr.bf16.mxu0 0
    %1340 = vmatpush1.bf16.xpose.msra.mxu0 0
    %1341 = vmatprep.subr.bf16.mxu0 0
    %1342 = vmatpush1.bf16.xpose.msra.mxu0 0
    %1343 = vmatprep.subr.bf16.mxu0 0
    %1344 = vmatpush1.bf16.xpose.msra.mxu0 0
    %1345 = vmatprep.subr.bf16.mxu0 0
    %1346 = vmatpush1.bf16.xpose.msra.mxu0 0
    %1347 = vmatprep.subr.bf16.mxu0 0
    %1348 = vmatpush1.bf16.xpose.msra.mxu0 0
    %1349 = vmatprep.subr.bf16.mxu0 0
    %1350 = vmatpush1.bf16.xpose.msra.mxu0 0
    %1351 = vmatprep.subr.bf16.mxu0 0
    %1352 = vmatpush1.bf16.xpose.msra.mxu0 0
    %1353 = vmatprep.subr.bf16.mxu0 0
    %1354 = vmatpush1.bf16.xpose.msra.mxu0 0
    %1355 = vmatprep.subr.bf16.mxu0 0
    %1356 = vmatpush1.bf16.xpose.msra.mxu0 0
    %1357 = vmatprep.subr.bf16.mxu0 0
    %1358 = vmatpush1.bf16.xpose.msra.mxu0 0
    %1359 = vmatprep.subr.bf16.mxu0 0
    %1360 = vmatpush1.bf16.xpose.msra.mxu0 0
    %1361 = vmatprep.subr.bf16.mxu0 0
    %1362 = vmatpush1.bf16.xpose.msra.mxu0 0
    %1363 = vmatprep.subr.bf16.mxu0 0
    %1364 = vmatpush1.bf16.xpose.msra.mxu0 0
    %1365 = vmatprep.subr.bf16.mxu0 0
    %1366 = vmatpush1.bf16.xpose.msra.mxu0 0
    %1367 = vmatprep.mubr.bf16.mxu0 0
    %1368 = vmatmul.mubr.bf16.gmra.mrb[0].mxu0 %v1293
    %v1369 = vpop.f32.mrb[0].mxu0
    %v1370 = vadd.f32 0.0, %v1369
    %v1371 = vpop.f32.mrb[0].mxu0
    %v1372 = vpop.f32.mrb[0].mxu0
    %v1373 = vadd.f32 0.0, %v1372
    %v1374 = vpop.f32.mrb[0].mxu0
    %1375 = vdwg.mxu0
    %v1376 = vmul.f32 %v1329, 0.17677669
    %v1377 = vmul.f32 %v1332, 0.17677669
    %v1378 = vmul.f32 %v1370, 0.17677669
    %v1379 = vmul.f32 %v1373, 0.17677669
    %v1380 = vsel %vm648, %v1376, -1e+09
    %v1381 = vsel %vm648, %v1377, -1e+09
    %v1382 = vsel %vm649, %v1378, -1e+09
    %v1383 = vsel %vm649, %v1379, -1e+09
    %v1384 = vsel %vm654, %v1380, -inf
    %1385 = vmax.xlane.f32.xlu0 %v1384
    %v1386 = vpop.xlane.xlu0 %1385
    %v1387 = vsel %vm654, %v1381, -inf
    %1388 = vmax.xlane.f32.xlu0 %v1387
    %v1389 = vpop.xlane.xlu0 %1388
    %v1390 = vsel %vm654, %v1382, -inf
    %1391 = vmax.xlane.f32.xlu0 %v1390
    %v1392 = vpop.xlane.xlu0 %1391
    %v1393 = vsel %vm654, %v1383, -inf
    %1394 = vmax.xlane.f32.xlu0 %v1393
    %v1395 = vpop.xlane.xlu0 %1394
    %v1396 = vsub.f32 %v1380, %v1386
    %v1397 = vsub.f32 %v1381, %v1389
    %v1398 = vsub.f32 %v1382, %v1392
    %v1399 = vsub.f32 %v1383, %v1395
    %v1400 = vmul.f32 %v1396, 1.442695
    %v1401 = vpow.pop %v1400
    %v1402 = vmul.f32 %v1397, 1.442695
    %v1403 = vpow.pop %v1402
    %v1404 = vmul.f32 %v1398, 1.442695
    %v1405 = vpow.pop %v1404
    %v1406 = vmul.f32 %v1399, 1.442695
    %v1407 = vpow.pop %v1406
    %v1408 = vsel %vm654, %v1401, 0.0
    %1409 = vadd.xlane.f32.xlu0 %v1408
    %v1410 = vpop.xlane.xlu0 %1409
    %v1411 = vsel %vm654, %v1403, 0.0
    %1412 = vadd.xlane.f32.xlu0 %v1411
    %v1413 = vpop.xlane.xlu0 %1412
    %v1414 = vsel %vm654, %v1405, 0.0
    %1415 = vadd.xlane.f32.xlu0 %v1414
    %v1416 = vpop.xlane.xlu0 %1415
    %v1417 = vsel %vm654, %v1407, 0.0
    %1418 = vadd.xlane.f32.xlu0 %v1417
    %v1419 = vpop.xlane.xlu0 %1418
    %v1420 = vrcp.pop %v1410
    %v1421 = vrcp.pop %v1413
    %v1422 = vrcp.pop %v1416
    %v1423 = vrcp.pop %v1419
    %v1424 = vmul.f32 %v1401, %v1420
    %v1425 = vmul.f32 %v1403, %v1421
    %v1426 = vmul.f32 %v1405, %v1422
    %v1427 = vmul.f32 %v1407, %v1423
    %v1428 = vpack.c.bf16 %v1425, %v1424
    %v1429 = vpack.c.bf16 %v1427, %v1426
    %v1431 = vsel %vm654, %v1428, 0
    %1433 = vmatprep.subr.bf16.mxu0 0
    %1434 = vmatpush1.bf16.msra.mxu0 %v547
    %1435 = vmatprep.subr.bf16.mxu0 0
    %1436 = vmatpush1.bf16.msra.mxu0 0
    %1437 = vmatprep.subr.bf16.mxu0 0
    %1438 = vmatpush1.bf16.msra.mxu0 0
    %1439 = vmatprep.subr.bf16.mxu0 0
    %1440 = vmatpush1.bf16.msra.mxu0 0
    %1441 = vmatprep.subr.bf16.mxu0 0
    %1442 = vmatpush1.bf16.msra.mxu0 0
    %1443 = vmatprep.subr.bf16.mxu0 0
    %1444 = vmatpush1.bf16.msra.mxu0 0
    %1445 = vmatprep.subr.bf16.mxu0 0
    %1446 = vmatpush1.bf16.msra.mxu0 0
    %1447 = vmatprep.subr.bf16.mxu0 0
    %1448 = vmatpush1.bf16.msra.mxu0 0
    %1449 = vmatprep.subr.bf16.mxu0 0
    %1450 = vmatpush1.bf16.msra.mxu0 0
    %1451 = vmatprep.subr.bf16.mxu0 0
    %1452 = vmatpush1.bf16.msra.mxu0 0
    %1453 = vmatprep.subr.bf16.mxu0 0
    %1454 = vmatpush1.bf16.msra.mxu0 0
    %1455 = vmatprep.subr.bf16.mxu0 0
    %1456 = vmatpush1.bf16.msra.mxu0 0
    %1457 = vmatprep.subr.bf16.mxu0 0
    %1458 = vmatpush1.bf16.msra.mxu0 0
    %1459 = vmatprep.subr.bf16.mxu0 0
    %1460 = vmatpush1.bf16.msra.mxu0 0
    %1461 = vmatprep.subr.bf16.mxu0 0
    %1462 = vmatpush1.bf16.msra.mxu0 0
    %1463 = vmatprep.subr.bf16.mxu0 0
    %1464 = vmatpush1.bf16.msra.mxu0 0
    %1465 = vmatprep.mubr.bf16.mxu0 0
    %1466 = vmatmul.mubr.bf16.gmra.mrb[0].mxu0 %v1431
    %v1467 = vpop.f32.mrb[0].mxu0
    %v1468 = vadd.f32 0.0, %v1467
    %v1469 = vpop.f32.mrb[0].mxu0
    %v1470 = vpop.f32.mrb[0].mxu0
    %v1471 = vadd.f32 0.0, %v1470
    %v1472 = vpop.f32.mrb[0].mxu0
    %1473 = vdwg.mxu0
    %v1475 = vsel %vm654, %v1429, 0
    %1477 = vmatprep.subr.bf16.mxu0 0
    %1478 = vmatpush1.bf16.msra.mxu0 %v548
    %1479 = vmatprep.subr.bf16.mxu0 0
    %1480 = vmatpush1.bf16.msra.mxu0 0
    %1481 = vmatprep.subr.bf16.mxu0 0
    %1482 = vmatpush1.bf16.msra.mxu0 0
    %1483 = vmatprep.subr.bf16.mxu0 0
    %1484 = vmatpush1.bf16.msra.mxu0 0
    %1485 = vmatprep.subr.bf16.mxu0 0
    %1486 = vmatpush1.bf16.msra.mxu0 0
    %1487 = vmatprep.subr.bf16.mxu0 0
    %1488 = vmatpush1.bf16.msra.mxu0 0
    %1489 = vmatprep.subr.bf16.mxu0 0
    %1490 = vmatpush1.bf16.msra.mxu0 0
    %1491 = vmatprep.subr.bf16.mxu0 0
    %1492 = vmatpush1.bf16.msra.mxu0 0
    %1493 = vmatprep.subr.bf16.mxu0 0
    %1494 = vmatpush1.bf16.msra.mxu0 0
    %1495 = vmatprep.subr.bf16.mxu0 0
    %1496 = vmatpush1.bf16.msra.mxu0 0
    %1497 = vmatprep.subr.bf16.mxu0 0
    %1498 = vmatpush1.bf16.msra.mxu0 0
    %1499 = vmatprep.subr.bf16.mxu0 0
    %1500 = vmatpush1.bf16.msra.mxu0 0
    %1501 = vmatprep.subr.bf16.mxu0 0
    %1502 = vmatpush1.bf16.msra.mxu0 0
    %1503 = vmatprep.subr.bf16.mxu0 0
    %1504 = vmatpush1.bf16.msra.mxu0 0
    %1505 = vmatprep.subr.bf16.mxu0 0
    %1506 = vmatpush1.bf16.msra.mxu0 0
    %1507 = vmatprep.subr.bf16.mxu0 0
    %1508 = vmatpush1.bf16.msra.mxu0 0
    %1509 = vmatprep.mubr.bf16.mxu0 0
    %1510 = vmatmul.mubr.bf16.gmra.mrb[0].mxu0 %v1475
    %v1511 = vpop.f32.mrb[0].mxu0
    %v1512 = vadd.f32 0.0, %v1511
    %v1513 = vpop.f32.mrb[0].mxu0
    %v1514 = vpop.f32.mrb[0].mxu0
    %v1515 = vadd.f32 0.0, %v1514
    %v1516 = vpop.f32.mrb[0].mxu0
    %1517 = vdwg.mxu0
    %v1518 = vmul.f32 %v1468, %v1287
    %v1519 = vmul.f32 %v1471, %v1287
    %v1520 = vmul.f32 %v1512, %v1287
    %v1521 = vmul.f32 %v1515, %v1287
    %v1522 = vadd.f32 %v1279, %v1518
    %v1523 = vadd.f32 %v1280, %v1519
    %v1524 = vadd.f32 %v1281, %v1520
    %v1525 = vadd.f32 %v1282, %v1521
    %v1526 = vpack.c.bf16 %v1523, %v1522
    %v1527 = vpack.c.bf16 %v1525, %v1524
    %v1528 = vpack.c.bf16 %v214, %v213
    %v1529 = vpack.c.bf16 %v216, %v215
    %v1530 = vpack.c.bf16 %v218, %v217
    %v1531 = vpack.c.bf16 %v220, %v219
    %v1532 = vpack.c.bf16 %v222, %v221
    %v1533 = vpack.c.bf16 %v224, %v223
    %v1534 = vpack.c.bf16 %v226, %v225
    %v1535 = vpack.c.bf16 %v228, %v227
    %1536 = vmatprep.subr.bf16.mxu0 0
    %1537 = vmatpush1.bf16.msra.mxu0 %v1528
    %1538 = vmatprep.subr.bf16.mxu0 0
    %1539 = vmatpush1.bf16.msra.mxu0 %v1529
    %1540 = vmatprep.subr.bf16.mxu0 0
    %1541 = vmatpush1.bf16.msra.mxu0 %v1530
    %1542 = vmatprep.subr.bf16.mxu0 0
    %1543 = vmatpush1.bf16.msra.mxu0 %v1531
    %1544 = vmatprep.subr.bf16.mxu0 0
    %1545 = vmatpush1.bf16.msra.mxu0 %v1532
    %1546 = vmatprep.subr.bf16.mxu0 0
    %1547 = vmatpush1.bf16.msra.mxu0 %v1533
    %1548 = vmatprep.subr.bf16.mxu0 0
    %1549 = vmatpush1.bf16.msra.mxu0 %v1534
    %1550 = vmatprep.subr.bf16.mxu0 0
    %1551 = vmatpush1.bf16.msra.mxu0 %v1535
    %1552 = vmatprep.subr.bf16.mxu0 0
    %1553 = vmatpush1.bf16.msra.mxu0 0
    %1554 = vmatprep.subr.bf16.mxu0 0
    %1555 = vmatpush1.bf16.msra.mxu0 0
    %1556 = vmatprep.subr.bf16.mxu0 0
    %1557 = vmatpush1.bf16.msra.mxu0 0
    %1558 = vmatprep.subr.bf16.mxu0 0
    %1559 = vmatpush1.bf16.msra.mxu0 0
    %1560 = vmatprep.subr.bf16.mxu0 0
    %1561 = vmatpush1.bf16.msra.mxu0 0
    %1562 = vmatprep.subr.bf16.mxu0 0
    %1563 = vmatpush1.bf16.msra.mxu0 0
    %1564 = vmatprep.subr.bf16.mxu0 0
    %1565 = vmatpush1.bf16.msra.mxu0 0
    %1566 = vmatprep.subr.bf16.mxu0 0
    %1567 = vmatpush1.bf16.msra.mxu0 0
    %1568 = vmatprep.mubr.bf16.mxu0 0
    %1569 = vmatmul.mubr.bf16.gmra.mrb[0].mxu0 %v1526
    %v1570 = vpop.f32.mrb[0].mxu0
    %v1571 = vadd.f32 0.0, %v1570
    %v1572 = vpop.f32.mrb[0].mxu0
    %v1573 = vpop.f32.mrb[0].mxu0
    %v1574 = vadd.f32 0.0, %v1573
    %v1575 = vpop.f32.mrb[0].mxu0
    %1576 = vmatprep.mubr.bf16.mxu0 0
    %1577 = vmatmul.mubr.bf16.gmra.mrb[0].mxu0 %v1527
    %v1578 = vpop.f32.mrb[0].mxu0
    %v1579 = vadd.f32 0.0, %v1578
    %v1580 = vpop.f32.mrb[0].mxu0
    %v1581 = vpop.f32.mrb[0].mxu0
    %v1582 = vadd.f32 0.0, %v1581
    %v1583 = vpop.f32.mrb[0].mxu0
    %1584 = vdwg.mxu0
    %v1585 = vadd.f32 %v318, %v1571
    %v1586 = vadd.f32 %v321, %v1574
    %v1587 = vadd.f32 %v326, %v1579
    %v1588 = vadd.f32 %v329, %v1582
    %1589 = vadd.xlane.f32.xlu0 %v1585
    %v1590 = vpop.xlane.xlu0 %1589
    %1591 = vadd.xlane.f32.xlu0 %v1586
    %v1592 = vpop.xlane.xlu0 %1591
    %1593 = vadd.xlane.f32.xlu0 %v1587
    %v1594 = vpop.xlane.xlu0 %1593
    %1595 = vadd.xlane.f32.xlu0 %v1588
    %v1596 = vpop.xlane.xlu0 %1595
    %v1597 = vrcp.pop 128.0
    %v1598 = vmul.f32 %v1590, %v1597
    %v1599 = vmul.f32 %v1592, %v1597
    %v1600 = vmul.f32 %v1594, %v1597
    %v1601 = vmul.f32 %v1596, %v1597
    %v1602 = vsub.f32 %v1585, %v1598
    %v1603 = vsub.f32 %v1586, %v1599
    %v1604 = vsub.f32 %v1587, %v1600
    %v1605 = vsub.f32 %v1588, %v1601
    %v1606 = vmul.f32 %v1602, %v1602
    %v1607 = vmul.f32 %v1603, %v1603
    %v1608 = vmul.f32 %v1604, %v1604
    %v1609 = vmul.f32 %v1605, %v1605
    %1610 = vadd.xlane.f32.xlu0 %v1606
    %v1611 = vpop.xlane.xlu0 %1610
    %1612 = vadd.xlane.f32.xlu0 %v1607
    %v1613 = vpop.xlane.xlu0 %1612
    %1614 = vadd.xlane.f32.xlu0 %v1608
    %v1615 = vpop.xlane.xlu0 %1614
    %1616 = vadd.xlane.f32.xlu0 %v1609
    %v1617 = vpop.xlane.xlu0 %1616
    %v1618 = vmul.f32 %v1611, %v1597
    %v1619 = vmul.f32 %v1613, %v1597
    %v1620 = vmul.f32 %v1615, %v1597
    %v1621 = vmul.f32 %v1617, %v1597
    %v1622 = vadd.f32 %v1618, 1e-05
    %v1623 = vadd.f32 %v1619, 1e-05
    %v1624 = vadd.f32 %v1620, 1e-05
    %v1625 = vadd.f32 %v1621, 1e-05
    %v1626 = vrsqrt.pop %v1622
    %v1627 = vrsqrt.pop %v1623
    %v1628 = vrsqrt.pop %v1624
    %v1629 = vrsqrt.pop %v1625
    %v1630 = vmul.f32 %v1602, %v1626
    %v1631 = vmul.f32 %v1603, %v1627
    %v1632 = vmul.f32 %v1604, %v1628
    %v1633 = vmul.f32 %v1605, %v1629
    %v1635 = vlaneseq
    %v1636 = vshrl.u32 %v1635, 7
    %v1637 = vsub.s32 0, %v1636
    %v1638 = vrot.slane %v263, %v1637
    %v1640 = vmul.f32 %v1630, %v1638
    %v1641 = vmul.f32 %v1631, %v1638
    %v1642 = vmul.f32 %v1632, %v1638
    %v1643 = vmul.f32 %v1633, %v1638
    %v1645 = vlaneseq
    %v1646 = vshrl.u32 %v1645, 7
    %v1647 = vsub.s32 0, %v1646
    %v1648 = vrot.slane %v264, %v1647
    %v1650 = vadd.f32 %v1640, %v1648
    %v1651 = vadd.f32 %v1641, %v1648
    %v1652 = vadd.f32 %v1642, %v1648
    %v1653 = vadd.f32 %v1643, %v1648
    %v1654 = vpack.c.bf16 %v1651, %v1650
    %v1655 = vpack.c.bf16 %v1653, %v1652
    %v1656 = vpack.c.bf16 %v230, %v229
    %v1657 = vpack.c.bf16 %v232, %v231
    %v1658 = vpack.c.bf16 %v234, %v233
    %v1659 = vpack.c.bf16 %v236, %v235
    %v1660 = vpack.c.bf16 %v238, %v237
    %v1661 = vpack.c.bf16 %v240, %v239
    %v1662 = vpack.c.bf16 %v242, %v241
    %v1663 = vpack.c.bf16 %v244, %v243
    %v1665 = vlaneseq
    %v1666 = vshrl.u32 %v1665, 7
    %v1667 = vsub.s32 0, %v1666
    %v1668 = vrot.slane %v245, %v1667
    %1670 = vmatprep.subr.bf16.mxu0 0
    %1671 = vmatpush1.bf16.msra.mxu0 %v1656
    %1672 = vmatprep.subr.bf16.mxu0 0
    %1673 = vmatpush1.bf16.msra.mxu0 %v1657
    %1674 = vmatprep.subr.bf16.mxu0 0
    %1675 = vmatpush1.bf16.msra.mxu0 %v1658
    %1676 = vmatprep.subr.bf16.mxu0 0
    %1677 = vmatpush1.bf16.msra.mxu0 %v1659
    %1678 = vmatprep.subr.bf16.mxu0 0
    %1679 = vmatpush1.bf16.msra.mxu0 %v1660
    %1680 = vmatprep.subr.bf16.mxu0 0
    %1681 = vmatpush1.bf16.msra.mxu0 %v1661
    %1682 = vmatprep.subr.bf16.mxu0 0
    %1683 = vmatpush1.bf16.msra.mxu0 %v1662
    %1684 = vmatprep.subr.bf16.mxu0 0
    %1685 = vmatpush1.bf16.msra.mxu0 %v1663
    %1686 = vmatprep.subr.bf16.mxu0 0
    %1687 = vmatpush1.bf16.msra.mxu0 0
    %1688 = vmatprep.subr.bf16.mxu0 0
    %1689 = vmatpush1.bf16.msra.mxu0 0
    %1690 = vmatprep.subr.bf16.mxu0 0
    %1691 = vmatpush1.bf16.msra.mxu0 0
    %1692 = vmatprep.subr.bf16.mxu0 0
    %1693 = vmatpush1.bf16.msra.mxu0 0
    %1694 = vmatprep.subr.bf16.mxu0 0
    %1695 = vmatpush1.bf16.msra.mxu0 0
    %1696 = vmatprep.subr.bf16.mxu0 0
    %1697 = vmatpush1.bf16.msra.mxu0 0
    %1698 = vmatprep.subr.bf16.mxu0 0
    %1699 = vmatpush1.bf16.msra.mxu0 0
    %1700 = vmatprep.subr.bf16.mxu0 0
    %1701 = vmatpush1.bf16.msra.mxu0 0
    %1702 = vmatprep.mubr.bf16.mxu0 0
    %1703 = vmatmul.mubr.bf16.gmra.mrb[0].mxu0 %v1654
    %v1704 = vpop.f32.mrb[0].mxu0
    %v1705 = vadd.f32 %v1668, %v1704
    %v1706 = vpop.f32.mrb[0].mxu0
    %v1707 = vpop.f32.mrb[0].mxu0
    %v1708 = vadd.f32 %v1668, %v1707
    %v1709 = vpop.f32.mrb[0].mxu0
    %1710 = vmatprep.mubr.bf16.mxu0 0
    %1711 = vmatmul.mubr.bf16.gmra.mrb[0].mxu0 %v1655
    %v1712 = vpop.f32.mrb[0].mxu0
    %v1713 = vadd.f32 %v1668, %v1712
    %v1714 = vpop.f32.mrb[0].mxu0
    %v1715 = vpop.f32.mrb[0].mxu0
    %v1716 = vadd.f32 %v1668, %v1715
    %v1717 = vpop.f32.mrb[0].mxu0
    %1718 = vdwg.mxu0
    %v1719 = vmax.f32 %v1705, 0.0
    %v1720 = vmax.f32 %v1708, 0.0
    %v1721 = vmax.f32 %v1713, 0.0
    %v1722 = vmax.f32 %v1716, 0.0
    %v1723 = vpack.c.bf16 %v1720, %v1719
    %v1724 = vpack.c.bf16 %v1722, %v1721
    %v1725 = vpack.c.bf16 %v247, %v246
    %v1726 = vpack.c.bf16 %v249, %v248
    %v1727 = vpack.c.bf16 %v251, %v250
    %v1728 = vpack.c.bf16 %v253, %v252
    %v1729 = vpack.c.bf16 %v255, %v254
    %v1730 = vpack.c.bf16 %v257, %v256
    %v1731 = vpack.c.bf16 %v259, %v258
    %v1732 = vpack.c.bf16 %v261, %v260
    %v1734 = vlaneseq
    %v1735 = vshrl.u32 %v1734, 7
    %v1736 = vsub.s32 0, %v1735
    %v1737 = vrot.slane %v262, %v1736
    %1739 = vmatprep.subr.bf16.mxu0 0
    %1740 = vmatpush1.bf16.msra.mxu0 %v1725
    %1741 = vmatprep.subr.bf16.mxu0 0
    %1742 = vmatpush1.bf16.msra.mxu0 %v1726
    %1743 = vmatprep.subr.bf16.mxu0 0
    %1744 = vmatpush1.bf16.msra.mxu0 %v1727
    %1745 = vmatprep.subr.bf16.mxu0 0
    %1746 = vmatpush1.bf16.msra.mxu0 %v1728
    %1747 = vmatprep.subr.bf16.mxu0 0
    %1748 = vmatpush1.bf16.msra.mxu0 %v1729
    %1749 = vmatprep.subr.bf16.mxu0 0
    %1750 = vmatpush1.bf16.msra.mxu0 %v1730
    %1751 = vmatprep.subr.bf16.mxu0 0
    %1752 = vmatpush1.bf16.msra.mxu0 %v1731
    %1753 = vmatprep.subr.bf16.mxu0 0
    %1754 = vmatpush1.bf16.msra.mxu0 %v1732
    %1755 = vmatprep.subr.bf16.mxu0 0
    %1756 = vmatpush1.bf16.msra.mxu0 0
    %1757 = vmatprep.subr.bf16.mxu0 0
    %1758 = vmatpush1.bf16.msra.mxu0 0
    %1759 = vmatprep.subr.bf16.mxu0 0
    %1760 = vmatpush1.bf16.msra.mxu0 0
    %1761 = vmatprep.subr.bf16.mxu0 0
    %1762 = vmatpush1.bf16.msra.mxu0 0
    %1763 = vmatprep.subr.bf16.mxu0 0
    %1764 = vmatpush1.bf16.msra.mxu0 0
    %1765 = vmatprep.subr.bf16.mxu0 0
    %1766 = vmatpush1.bf16.msra.mxu0 0
    %1767 = vmatprep.subr.bf16.mxu0 0
    %1768 = vmatpush1.bf16.msra.mxu0 0
    %1769 = vmatprep.subr.bf16.mxu0 0
    %1770 = vmatpush1.bf16.msra.mxu0 0
    %1771 = vmatprep.mubr.bf16.mxu0 0
    %1772 = vmatmul.mubr.bf16.gmra.mrb[0].mxu0 %v1723
    %v1773 = vpop.f32.mrb[0].mxu0
    %v1774 = vadd.f32 %v1737, %v1773
    %v1775 = vpop.f32.mrb[0].mxu0
    %v1776 = vpop.f32.mrb[0].mxu0
    %v1777 = vadd.f32 %v1737, %v1776
    %v1778 = vpop.f32.mrb[0].mxu0
    %1779 = vmatprep.mubr.bf16.mxu0 0
    %1780 = vmatmul.mubr.bf16.gmra.mrb[0].mxu0 %v1724
    %v1781 = vpop.f32.mrb[0].mxu0
    %v1782 = vadd.f32 %v1737, %v1781
    %v1783 = vpop.f32.mrb[0].mxu0
    %v1784 = vpop.f32.mrb[0].mxu0
    %v1785 = vadd.f32 %v1737, %v1784
    %v1786 = vpop.f32.mrb[0].mxu0
    %1787 = vdwg.mxu0
    %v1788 = vadd.f32 %v1650, %v1774
    %v1789 = vadd.f32 %v1651, %v1777
    %v1790 = vadd.f32 %v1652, %v1782
    %v1791 = vadd.f32 %v1653, %v1785
    %1792 = vadd.xlane.f32.xlu0 %v1788
    %v1793 = vpop.xlane.xlu0 %1792
    %1794 = vadd.xlane.f32.xlu0 %v1789
    %v1795 = vpop.xlane.xlu0 %1794
    %1796 = vadd.xlane.f32.xlu0 %v1790
    %v1797 = vpop.xlane.xlu0 %1796
    %1798 = vadd.xlane.f32.xlu0 %v1791
    %v1799 = vpop.xlane.xlu0 %1798
    %v1800 = vmul.f32 %v1793, %v1597
    %v1801 = vmul.f32 %v1795, %v1597
    %v1802 = vmul.f32 %v1797, %v1597
    %v1803 = vmul.f32 %v1799, %v1597
    %v1804 = vsub.f32 %v1788, %v1800
    %v1805 = vsub.f32 %v1789, %v1801
    %v1806 = vsub.f32 %v1790, %v1802
    %v1807 = vsub.f32 %v1791, %v1803
    %v1808 = vmul.f32 %v1804, %v1804
    %v1809 = vmul.f32 %v1805, %v1805
    %v1810 = vmul.f32 %v1806, %v1806
    %v1811 = vmul.f32 %v1807, %v1807
    %1812 = vadd.xlane.f32.xlu0 %v1808
    %v1813 = vpop.xlane.xlu0 %1812
    %1814 = vadd.xlane.f32.xlu0 %v1809
    %v1815 = vpop.xlane.xlu0 %1814
    %1816 = vadd.xlane.f32.xlu0 %v1810
    %v1817 = vpop.xlane.xlu0 %1816
    %1818 = vadd.xlane.f32.xlu0 %v1811
    %v1819 = vpop.xlane.xlu0 %1818
    %v1820 = vmul.f32 %v1813, %v1597
    %v1821 = vmul.f32 %v1815, %v1597
    %v1822 = vmul.f32 %v1817, %v1597
    %v1823 = vmul.f32 %v1819, %v1597
    %v1824 = vadd.f32 %v1820, 1e-05
    %v1825 = vadd.f32 %v1821, 1e-05
    %v1826 = vadd.f32 %v1822, 1e-05
    %v1827 = vadd.f32 %v1823, 1e-05
    %v1828 = vrsqrt.pop %v1824
    %v1829 = vrsqrt.pop %v1825
    %v1830 = vrsqrt.pop %v1826
    %v1831 = vrsqrt.pop %v1827
    %v1832 = vmul.f32 %v1804, %v1828
    %v1833 = vmul.f32 %v1805, %v1829
    %v1834 = vmul.f32 %v1806, %v1830
    %v1835 = vmul.f32 %v1807, %v1831
    %v1837 = vlaneseq
    %v1838 = vshrl.u32 %v1837, 7
    %v1839 = vsub.s32 0, %v1838
    %v1840 = vrot.slane %v265, %v1839
    %v1842 = vmul.f32 %v1832, %v1840
    %v1843 = vmul.f32 %v1833, %v1840
    %v1844 = vmul.f32 %v1834, %v1840
    %v1845 = vmul.f32 %v1835, %v1840
    %v1847 = vlaneseq
    %v1848 = vshrl.u32 %v1847, 7
    %v1849 = vsub.s32 0, %v1848
    %v1850 = vrot.slane %v266, %v1849
    %v1852 = vadd.f32 %v1842, %v1850
    %v1853 = vadd.f32 %v1843, %v1850
    %v1854 = vadd.f32 %v1844, %v1850
    %v1855 = vadd.f32 %v1845, %v1850
    %1856 = vst [vmem:[#allocation16] sm:$0xff] %v1852
    %1857 = vst [vmem:[#allocation16 + $0x8] sm:$0xff] %v1853
    %1858 = vst [vmem:[#allocation16 + $0x10] sm:$0xff] %v1854
    %1859 = vst [vmem:[#allocation16 + $0x18] sm:$0xff] %v1855
    // Predicated region
    $region94: #{tpu_custom_call.1} parent=1 // pred_check
      _
    $region95: #{tpu_custom_call.1} parent=1 // pred_check_branch
      %1861 = sbr.rel (0) target = $region97
    $region96: #{tpu_custom_call.1} parent=1 // pred_region
      %s1863 = ssub.s32 512, 512
      %1864 = vsyncadd [#allocation4], %s1863
      %s1865 = sshll.u32 [#allocation16], 4
      %s1866 = int_to_ptr.vmem [resolvable:$true] %s1865
      %1871 = dma.vmem_to_hbm [thread:$0]  %s1866, 512, %s15, [#allocation4], 128, 128, 8
    $region97: #{tpu_custom_call.1} parent=1 // pred_fallthru
      _
    // Predicated region
    $region98: #{tpu_custom_call.1} parent=1 // pred_check
      _
    $region99: #{tpu_custom_call.1} parent=1 // pred_check_branch
      %1873 = sbr.rel (0) target = $region101
    $region100: #{tpu_custom_call.1} parent=1 // pred_region
      %1874 = dma.done [#allocation4], 512
    $region101: #{tpu_custom_call.1} parent=1 // pred_fallthru
      _
    %1875 = vsyncpa [#allocation3], 1
    %1876 = vsyncpa [#allocation6], 1
    %1877 = vsyncpa [#allocation9], 1
    %1878 = vsyncpa [#allocation12], 1
    %1879 = vsyncpa [#allocation15], 1
    %1880 = vsyncpa [#allocation4], 1

</llo_original>
